<compile_context>
chip_gen: v5e
topology: v5e:2x2
jax: 0.10.0
libtpu: 0.0.40
codegen_flags: <defaults>
</compile_context>

<pallas_src>
import functools

import jax
import jax.numpy as jnp
from jax import lax
from jax.experimental import pallas as pl
from jax.experimental.pallas import tpu as pltpu


# ---------------------------------------------------------------------------
# Fused kernel: (im2col-matmul conv) + BN(scale,shift) [+ residual] [+ ReLU]
# ---------------------------------------------------------------------------
def _fused_conv_kernel(*refs, add_residual, apply_relu):
    if add_residual:
        p_ref, w_ref, scale_ref, shift_ref, res_ref, o_ref = refs
    else:
        p_ref, w_ref, scale_ref, shift_ref, o_ref = refs
        res_ref = None

    # conv-as-matmul on the MXU, f32 accumulation
    y = jnp.dot(p_ref[...], w_ref[...], preferred_element_type=jnp.float32)
    # folded BatchNorm: per-output-channel scale + shift
    y = y * scale_ref[...] + shift_ref[...]
    if add_residual:
        y = y + res_ref[...].astype(jnp.float32)
    if apply_relu:
        y = jnp.maximum(y, 0.0)
    o_ref[...] = y.astype(o_ref.dtype)


def _im2col_3x3(x):
    """x: (B, H, W, C) -> patches (B*H*W, 9*C) for a 3x3, stride-1, pad-1 conv."""
    B, H, W, C = x.shape
    xp = jnp.pad(x, ((0, 0), (1, 1), (1, 1), (0, 0)))
    cols = []
    for dy in range(3):
        for dx in range(3):
            cols.append(xp[:, dy:dy + H, dx:dx + W, :])
    patches = jnp.concatenate(cols, axis=-1)          # (B, H, W, 9*C)
    return patches.reshape(B * H * W, 9 * C)


def _pick_row_tile(m: int, pref: int = 256) -> int:
    """Largest multiple of 8 <= pref that divides m; fall back to full m."""
    if m % 8 != 0:
        return m
    best = m
    for t in range(8, min(m, pref) + 1, 8):
        if m % t == 0:
            best = t
    return best


def conv3x3_bn_act(x, w_hwio, scale, shift, residual=None, apply_relu=True):
    """y = [relu]( conv3x3(x, w) * scale + shift [+ residual] ).

    x: (B, H, W, Cin) NHWC, w_hwio: (3, 3, Cin, Cout), scale/shift: (Cout,).
    residual: optional (B, H, W, Cout).
    """
    B, H, W, Cin = x.shape
    Cout = w_hwio.shape[-1]

    patches = _im2col_3x3(x)                    # (M, 9*Cin)
    M, K = patches.shape
    w_flat = w_hwio.reshape(K, Cout)
    tm = _pick_row_tile(M)
    grid = (M // tm,)

    in_specs = [
        pl.BlockSpec((tm, K), lambda i: (i, 0)),        # patch rows (tiled)
        pl.BlockSpec((K, Cout), lambda i: (0, 0)),      # weights: VMEM-resident
        pl.BlockSpec((1, Cout), lambda i: (0, 0)),      # BN scale
        pl.BlockSpec((1, Cout), lambda i: (0, 0)),      # BN shift
    ]
    args = [patches, w_flat, scale.reshape(1, Cout), shift.reshape(1, Cout)]
    add_residual = residual is not None
    if add_residual:
        in_specs.append(pl.BlockSpec((tm, Cout), lambda i: (i, 0)))
        args.append(residual.reshape(M, Cout))

    kernel = functools.partial(
        _fused_conv_kernel, add_residual=add_residual, apply_relu=apply_relu
    )
    out = pl.pallas_call(
        kernel,
        out_shape=jax.ShapeDtypeStruct((M, Cout), x.dtype),
        grid_spec=pltpu.PrefetchScalarGridSpec(
            num_scalar_prefetch=0,
            grid=grid,
            in_specs=in_specs,
            out_specs=pl.BlockSpec((tm, Cout), lambda i: (i, 0)),
        ),
        compiler_params=pltpu.CompilerParams(
            dimension_semantics=("parallel",),
        ),
    )(*args)
    return out.reshape(B, H, W, Cout)


# ---------------------------------------------------------------------------
# Block forward (stride=1, i_downsample=None)
# ---------------------------------------------------------------------------
_BN_EPS = 1e-5


@jax.jit
def block_forward(x, params):
    gamma, beta, mean, var = params["bn2"]
    scale = gamma / jnp.sqrt(var + _BN_EPS)
    shift = beta - mean * scale

    identity = x
    # x = relu(batch_norm2(conv1(x)))
    h = conv3x3_bn_act(x, params["w1"], scale, shift, residual=None, apply_relu=True)
    # x = batch_norm2(conv2(x)); x += identity; x = relu(x)
    y = conv3x3_bn_act(h, params["w2"], scale, shift, residual=identity, apply_relu=True)
    return y


def reference_block(x, params):
    """Pure-JAX reference using lax.conv (independent of the im2col path)."""
    gamma, beta, mean, var = params["bn2"]

    def conv(a, w):
        return lax.conv_general_dilated(
            a, w, window_strides=(1, 1), padding=((1, 1), (1, 1)),
            dimension_numbers=("NHWC", "HWIO", "NHWC"))

    def bn(a):
        return (a - mean) / jnp.sqrt(var + _BN_EPS) * gamma + beta

    h = jnp.maximum(bn(conv(x, params["w1"])), 0.0)
    y = bn(conv(h, params["w2"])) + x
    return jnp.maximum(y, 0.0)


if __name__ == "__main__":
    key = jax.random.PRNGKey(0)
    B, H, W, C = 2, 16, 16, 32          # small shapes; in_channels == out_channels
    ks = jax.random.split(key, 7)

    x = jax.random.normal(ks[0], (B, H, W, C), jnp.float32)
    w_scale = 1.0 / (3 * 3 * C) ** 0.5
    params = {
        "w1": jax.random.normal(ks[1], (3, 3, C, C), jnp.float32) * w_scale,
        "w2": jax.random.normal(ks[2], (3, 3, C, C), jnp.float32) * w_scale,
        "bn2": (
            jax.random.uniform(ks[3], (C,), jnp.float32, 0.5, 1.5),   # gamma
            jax.random.normal(ks[4], (C,), jnp.float32) * 0.1,        # beta
            jax.random.normal(ks[5], (C,), jnp.float32) * 0.1,        # running_mean
            jax.random.uniform(ks[6], (C,), jnp.float32, 0.5, 1.5),   # running_var
        ),
    }

    out = jax.block_until_ready(block_forward(x, params))
    assert out.shape == (B, H, W, C), out.shape

    ref = jax.block_until_ready(reference_block(x, params))
    max_err = float(jnp.max(jnp.abs(out - ref)))
    assert jnp.allclose(out, ref, atol=1e-4, rtol=1e-4), max_err

    print("KERNEL_OK")
</pallas_src>

<mosaic_0001>
module attributes {stable_mosaic.version = 11 : i64} {
  func.func @_fused_conv_kernel(%arg0: i32, %arg1: memref<256x288xf32, #tpu.memory_space<vmem>>, %arg2: memref<288x32xf32, #tpu.memory_space<vmem>>, %arg3: memref<1x32xf32, #tpu.memory_space<vmem>>, %arg4: memref<1x32xf32, #tpu.memory_space<vmem>>, %arg5: memref<256x32xf32, #tpu.memory_space<vmem>>) attributes {dimension_semantics = [#tpu.dimension_semantics<parallel>], iteration_bounds = array<i64: 2>, scalar_prefetch = 0 : i64, scratch_operands = 0 : i64, tpu.core_type = #tpu.core_type<tc>, window_params = [{transform_indices = @transform_0, window_bounds = array<i64: 256, 288>}, {pipeline_mode = #tpu.pipeline_mode<synchronous>, transform_indices = @transform_1, window_bounds = array<i64: 288, 32>}, {pipeline_mode = #tpu.pipeline_mode<synchronous>, transform_indices = @transform_2, window_bounds = array<i64: 1, 32>}, {pipeline_mode = #tpu.pipeline_mode<synchronous>, transform_indices = @transform_3, window_bounds = array<i64: 1, 32>}, {transform_indices = @transform_4, window_bounds = array<i64: 256, 32>}]} {
    %c0 = arith.constant 0 : index
    %c0_0 = arith.constant 0 : index
    %0 = vector.load %arg1[%c0, %c0_0] : memref<256x288xf32, #tpu.memory_space<vmem>>, vector<256x288xf32>
    %c0_1 = arith.constant 0 : index
    %c0_2 = arith.constant 0 : index
    %1 = vector.load %arg2[%c0_1, %c0_2] : memref<288x32xf32, #tpu.memory_space<vmem>>, vector<288x32xf32>
    %cst = arith.constant dense<0.000000e+00> : vector<256x32xf32>
    %2 = tpu.matmul %0, %1, %cst {dimension_numbers = #tpu.dot_dimension_numbers<[1], [0], [0], [1], [0, 0, 1, 1], [], []>} : vector<256x288xf32>, vector<288x32xf32>, vector<256x32xf32> -> vector<256x32xf32>
    %c0_3 = arith.constant 0 : index
    %c0_4 = arith.constant 0 : index
    %3 = vector.load %arg3[%c0_3, %c0_4] : memref<1x32xf32, #tpu.memory_space<vmem>>, vector<1x32xf32>
    %4 = vector.broadcast %3 : vector<1x32xf32> to vector<256x32xf32>
    %5 = arith.mulf %2, %4 : vector<256x32xf32>
    %c0_5 = arith.constant 0 : index
    %c0_6 = arith.constant 0 : index
    %6 = vector.load %arg4[%c0_5, %c0_6] : memref<1x32xf32, #tpu.memory_space<vmem>>, vector<1x32xf32>
    %7 = vector.broadcast %6 : vector<1x32xf32> to vector<256x32xf32>
    %8 = arith.addf %5, %7 : vector<256x32xf32>
    %cst_7 = arith.constant 0.000000e+00 : f32
    %9 = vector.broadcast %cst_7 : f32 to vector<256x32xf32>
    %10 = arith.maximumf %8, %9 : vector<256x32xf32>
    %c0_8 = arith.constant 0 : index
    %c0_9 = arith.constant 0 : index
    %11 = vector.load %arg5[%c0_8, %c0_9] : memref<256x32xf32, #tpu.memory_space<vmem>>, vector<256x32xf32>
    tpu.vector_store %arg5[%c0_8, %c0_9], %10 {strides = array<i32>} : memref<256x32xf32, #tpu.memory_space<vmem>>, vector<256x32xf32>,
    return
  }
  func.func @transform_0(%arg0: i32) -> (i32, i32) {
    %c0_i32 = arith.constant 0 : i32
    %c0_i32_0 = arith.constant 0 : i32
    return %arg0, %c0_i32 : i32, i32
  }
  func.func @transform_1(%arg0: i32) -> (i32, i32) {
    %c0_i32 = arith.constant 0 : i32
    %c0_i32_0 = arith.constant 0 : i32
    %c0_i32_1 = arith.constant 0 : i32
    return %c0_i32, %c0_i32_0 : i32, i32
  }
  func.func @transform_2(%arg0: i32) -> (i32, i32) {
    %c0_i32 = arith.constant 0 : i32
    %c0_i32_0 = arith.constant 0 : i32
    %c0_i32_1 = arith.constant 0 : i32
    return %c0_i32, %c0_i32_0 : i32, i32
  }
  func.func @transform_3(%arg0: i32) -> (i32, i32) {
    %c0_i32 = arith.constant 0 : i32
    %c0_i32_0 = arith.constant 0 : i32
    %c0_i32_1 = arith.constant 0 : i32
    return %c0_i32, %c0_i32_0 : i32, i32
  }
  func.func @transform_4(%arg0: i32) -> (i32, i32) {
    %c0_i32 = arith.constant 0 : i32
    %c0_i32_0 = arith.constant 0 : i32
    return %arg0, %c0_i32 : i32, i32
  }
}

module attributes {stable_mosaic.version = 11 : i64} {
  func.func @_fused_conv_kernel(%arg0: i32, %arg1: memref<256x288xf32, #tpu.memory_space<vmem>>, %arg2: memref<288x32xf32, #tpu.memory_space<vmem>>, %arg3: memref<1x32xf32, #tpu.memory_space<vmem>>, %arg4: memref<1x32xf32, #tpu.memory_space<vmem>>, %arg5: memref<256x32xf32, #tpu.memory_space<vmem>>, %arg6: memref<256x32xf32, #tpu.memory_space<vmem>>) attributes {dimension_semantics = [#tpu.dimension_semantics<parallel>], iteration_bounds = array<i64: 2>, scalar_prefetch = 0 : i64, scratch_operands = 0 : i64, tpu.core_type = #tpu.core_type<tc>, window_params = [{transform_indices = @transform_0, window_bounds = array<i64: 256, 288>}, {pipeline_mode = #tpu.pipeline_mode<synchronous>, transform_indices = @transform_1, window_bounds = array<i64: 288, 32>}, {pipeline_mode = #tpu.pipeline_mode<synchronous>, transform_indices = @transform_2, window_bounds = array<i64: 1, 32>}, {pipeline_mode = #tpu.pipeline_mode<synchronous>, transform_indices = @transform_3, window_bounds = array<i64: 1, 32>}, {transform_indices = @transform_4, window_bounds = array<i64: 256, 32>}, {transform_indices = @transform_5, window_bounds = array<i64: 256, 32>}]} {
    %c0 = arith.constant 0 : index
    %c0_0 = arith.constant 0 : index
    %0 = vector.load %arg1[%c0, %c0_0] : memref<256x288xf32, #tpu.memory_space<vmem>>, vector<256x288xf32>
    %c0_1 = arith.constant 0 : index
    %c0_2 = arith.constant 0 : index
    %1 = vector.load %arg2[%c0_1, %c0_2] : memref<288x32xf32, #tpu.memory_space<vmem>>, vector<288x32xf32>
    %cst = arith.constant dense<0.000000e+00> : vector<256x32xf32>
    %2 = tpu.matmul %0, %1, %cst {dimension_numbers = #tpu.dot_dimension_numbers<[1], [0], [0], [1], [0, 0, 1, 1], [], []>} : vector<256x288xf32>, vector<288x32xf32>, vector<256x32xf32> -> vector<256x32xf32>
    %c0_3 = arith.constant 0 : index
    %c0_4 = arith.constant 0 : index
    %3 = vector.load %arg3[%c0_3, %c0_4] : memref<1x32xf32, #tpu.memory_space<vmem>>, vector<1x32xf32>
    %4 = vector.broadcast %3 : vector<1x32xf32> to vector<256x32xf32>
    %5 = arith.mulf %2, %4 : vector<256x32xf32>
    %c0_5 = arith.constant 0 : index
    %c0_6 = arith.constant 0 : index
    %6 = vector.load %arg4[%c0_5, %c0_6] : memref<1x32xf32, #tpu.memory_space<vmem>>, vector<1x32xf32>
    %7 = vector.broadcast %6 : vector<1x32xf32> to vector<256x32xf32>
    %8 = arith.addf %5, %7 : vector<256x32xf32>
    %c0_7 = arith.constant 0 : index
    %c0_8 = arith.constant 0 : index
    %9 = vector.load %arg5[%c0_7, %c0_8] : memref<256x32xf32, #tpu.memory_space<vmem>>, vector<256x32xf32>
    %10 = arith.addf %8, %9 : vector<256x32xf32>
    %cst_9 = arith.constant 0.000000e+00 : f32
    %11 = vector.broadcast %cst_9 : f32 to vector<256x32xf32>
    %12 = arith.maximumf %10, %11 : vector<256x32xf32>
    %c0_10 = arith.constant 0 : index
    %c0_11 = arith.constant 0 : index
    %13 = vector.load %arg6[%c0_10, %c0_11] : memref<256x32xf32, #tpu.memory_space<vmem>>, vector<256x32xf32>
    tpu.vector_store %arg6[%c0_10, %c0_11], %12 {strides = array<i32>} : memref<256x32xf32, #tpu.memory_space<vmem>>, vector<256x32xf32>,
    return
  }
  func.func @transform_0(%arg0: i32) -> (i32, i32) {
    %c0_i32 = arith.constant 0 : i32
    %c0_i32_0 = arith.constant 0 : i32
    return %arg0, %c0_i32 : i32, i32
  }
  func.func @transform_1(%arg0: i32) -> (i32, i32) {
    %c0_i32 = arith.constant 0 : i32
    %c0_i32_0 = arith.constant 0 : i32
    %c0_i32_1 = arith.constant 0 : i32
    return %c0_i32, %c0_i32_0 : i32, i32
  }
  func.func @transform_2(%arg0: i32) -> (i32, i32) {
    %c0_i32 = arith.constant 0 : i32
    %c0_i32_0 = arith.constant 0 : i32
    %c0_i32_1 = arith.constant 0 : i32
    return %c0_i32, %c0_i32_0 : i32, i32
  }
  func.func @transform_3(%arg0: i32) -> (i32, i32) {
    %c0_i32 = arith.constant 0 : i32
    %c0_i32_0 = arith.constant 0 : i32
    %c0_i32_1 = arith.constant 0 : i32
    return %c0_i32, %c0_i32_0 : i32, i32
  }
  func.func @transform_4(%arg0: i32) -> (i32, i32) {
    %c0_i32 = arith.constant 0 : i32
    %c0_i32_0 = arith.constant 0 : i32
    return %arg0, %c0_i32 : i32, i32
  }
  func.func @transform_5(%arg0: i32) -> (i32, i32) {
    %c0_i32 = arith.constant 0 : i32
    %c0_i32_0 = arith.constant 0 : i32
    return %arg0, %c0_i32 : i32, i32
  }
}

</mosaic_0001>

<llo_original>
// kernel: block_forward.2
$region0: #{block_forward.2}
  #allocation0 [shape = 'u32[]', space=smem, size = 0x4, offset = 0x4, fixed_abs, tag = 'smem constant byte address 0x4 - core index']
  #allocation1 [shape = 'u32[72,128]{1,0:T(1,128)}', space=vmem, size = 0x9000, scoped, tag = 'internal scratch']
  %s0 = inlined_call_operand.vmem [shape: f32[512,288], index: 0, kind: input, shape index: {}]
  %s1 = inlined_call_operand.vmem [shape: f32[288,32], index: 1, kind: input, shape index: {}]
  %s2 = inlined_call_operand.vmem [shape: f32[1,32], index: 2, kind: input, shape index: {}]
  %s3 = inlined_call_operand.vmem [shape: f32[1,32], index: 3, kind: input, shape index: {}]
  %s4 = inlined_call_operand.vmem [shape: f32[512,32], index: 4, kind: output, shape index: {}]
  %s5 = sld [smem:[#allocation0]]
  $region49: #{block_forward.2} parent=0
    _
  %s7 = ssub.s32 1, %s5
  %s8 = scalar_select 0, %s7, %s5
  loop: start=0, step=1, limit=4
  $region2: #{block_forward.2} parent=0 // loop_pre_header
    _
  $region3: #{block_forward.2} parent=0 // loop_header
    %s10 = sphi 0, %s14
    %p11 = scmp.ge.s32.totalorder %s10, 4
    %s20 = sphi 0, %s22
    %s23 = sphi 0, %s20
    %s24 = sphi 0, %s23
    %s40 = sphi 0, %s24
    %s44 = sphi 0, %s44
    %s46 = sphi 0, %s44
    %s47 = sphi 0, %s46
    %s61 = sphi 0, %s47
    %s65 = sphi 0, %s65
    %s67 = sphi 0, %s65
    %s68 = sphi 0, %s67
    %s82 = sphi 0, %s68
    %s86 = sphi 0, %s86
    %s88 = sphi 0, %s86
    %s89 = sphi 0, %s88
    %s103 = sphi 0, %s89
    %s109 = sphi 0, %s111
    %s112 = sphi 0, %s109
    %s113 = sphi 0, %s112
    %s129 = sphi 0, %s113
  $region4: #{block_forward.2} parent=0 // loop_header_branch
    %13 = sbr.rel (%p11) target = $region8
  $region5: #{block_forward.2} parent=0 // loop_body
    %s15 = ssub.s32 %s10, 1
    %s16 = ssub.s32 %s10, 2
    %s17 = sadd.s32 %s10, 1
    %s18 = ssub.s32 %s10, %s17
    %p19 = scmp.eq.s32.totalorder %s18, 0
    %s21 = sadd.s32 %s20, 1
    %s22 = scalar_select %p19, %s20, %s21
    %p25 = pneg %p19
    %p26 = scmp.eq.s32.totalorder %s10, 1
    %p27 = por %p25, %p26
    %p28 = scmp.ne.s32.totalorder %s20, %s23
    %p29 = scmp.eq.s32.totalorder %s10, 0
    %p30 = por %p28, %p29
    %p31 = scmp.ne.s32.totalorder %s20, %s23
    %p32 = scmp.eq.s32.totalorder %s15, 1
    %p33 = por %p31, %p32
    %p34 = scmp.ne.s32.totalorder %s23, %s24
    %p35 = scmp.eq.s32.totalorder %s15, 0
    %p36 = por %p34, %p35
    %p37 = scmp.ne.s32.totalorder %s23, %s24
    %p38 = scmp.eq.s32.totalorder %s16, 1
    %p39 = por %p37, %p38
    %p41 = scmp.ne.s32.totalorder %s24, %s40
    %p42 = scmp.eq.s32.totalorder %s16, 0
    %p43 = por %p41, %p42
    %s45 = sadd.s32 %s44, 1
    %p48 = scmp.eq.s32.totalorder %s10, 1
    %p49 = scmp.ne.s32.totalorder %s44, %s46
    %p50 = scmp.eq.s32.totalorder %s10, 0
    %p51 = por %p49, %p50
    %p52 = scmp.ne.s32.totalorder %s44, %s46
    %p53 = scmp.eq.s32.totalorder %s15, 1
    %p54 = por %p52, %p53
    %p55 = scmp.ne.s32.totalorder %s46, %s47
    %p56 = scmp.eq.s32.totalorder %s15, 0
    %p57 = por %p55, %p56
    %p58 = scmp.ne.s32.totalorder %s46, %s47
    %p59 = scmp.eq.s32.totalorder %s16, 1
    %p60 = por %p58, %p59
    %p62 = scmp.ne.s32.totalorder %s47, %s61
    %p63 = scmp.eq.s32.totalorder %s16, 0
    %p64 = por %p62, %p63
    %s66 = sadd.s32 %s65, 1
    %p69 = scmp.eq.s32.totalorder %s10, 1
    %p70 = scmp.ne.s32.totalorder %s65, %s67
    %p71 = scmp.eq.s32.totalorder %s10, 0
    %p72 = por %p70, %p71
    %p73 = scmp.ne.s32.totalorder %s65, %s67
    %p74 = scmp.eq.s32.totalorder %s15, 1
    %p75 = por %p73, %p74
    %p76 = scmp.ne.s32.totalorder %s67, %s68
    %p77 = scmp.eq.s32.totalorder %s15, 0
    %p78 = por %p76, %p77
    %p79 = scmp.ne.s32.totalorder %s67, %s68
    %p80 = scmp.eq.s32.totalorder %s16, 1
    %p81 = por %p79, %p80
    %p83 = scmp.ne.s32.totalorder %s68, %s82
    %p84 = scmp.eq.s32.totalorder %s16, 0
    %p85 = por %p83, %p84
    %s87 = sadd.s32 %s86, 1
    %p90 = scmp.eq.s32.totalorder %s10, 1
    %p91 = scmp.ne.s32.totalorder %s86, %s88
    %p92 = scmp.eq.s32.totalorder %s10, 0
    %p93 = por %p91, %p92
    %p94 = scmp.ne.s32.totalorder %s86, %s88
    %p95 = scmp.eq.s32.totalorder %s15, 1
    %p96 = por %p94, %p95
    %p97 = scmp.ne.s32.totalorder %s88, %s89
    %p98 = scmp.eq.s32.totalorder %s15, 0
    %p99 = por %p97, %p98
    %p100 = scmp.ne.s32.totalorder %s88, %s89
    %p101 = scmp.eq.s32.totalorder %s16, 1
    %p102 = por %p100, %p101
    %p104 = scmp.ne.s32.totalorder %s89, %s103
    %p105 = scmp.eq.s32.totalorder %s16, 0
    %p106 = por %p104, %p105
    %s107 = ssub.s32 %s10, %s17
    %p108 = scmp.eq.s32.totalorder %s107, 0
    %s110 = sadd.s32 %s109, 1
    %s111 = scalar_select %p108, %s109, %s110
    %p114 = pneg %p108
    %p115 = scmp.eq.s32.totalorder %s10, 1
    %p116 = por %p114, %p115
    %p117 = scmp.ne.s32.totalorder %s109, %s112
    %p118 = scmp.eq.s32.totalorder %s10, 0
    %p119 = por %p117, %p118
    %p120 = scmp.ne.s32.totalorder %s109, %s112
    %p121 = scmp.eq.s32.totalorder %s15, 1
    %p122 = por %p120, %p121
    %p123 = scmp.ne.s32.totalorder %s112, %s113
    %p124 = scmp.eq.s32.totalorder %s15, 0
    %p125 = por %p123, %p124
    %p126 = scmp.ne.s32.totalorder %s112, %s113
    %p127 = scmp.eq.s32.totalorder %s16, 1
    %p128 = por %p126, %p127
    %p130 = scmp.ne.s32.totalorder %s113, %s129
    %p131 = scmp.eq.s32.totalorder %s16, 0
    %p132 = por %p130, %p131
    %p133 = scmp.le.s32.totalorder 1, %s10
    %p134 = scmp.lt.s32.totalorder %s10, 3
    %p135 = pnand %p133, %p134
    %p136 = pneg %p135
    // Predicated region
    $region9: #{block_forward.2} parent=5 // pred_check
      _
    $region10: #{block_forward.2} parent=5 // pred_check_branch
      %138 = sbr.rel (%p135) target = $region12
    $region11: #{block_forward.2} parent=5 // pred_region
      %s139 = ssub.s32 %s10, 1
      // Predicated region
      $region13: #{block_forward.2} parent=11 // pred_check
        %p140 = pneg %p57
      $region14: #{block_forward.2} parent=11 // pred_check_branch
        %142 = sbr.rel (%p140) target = $region16
      $region15: #{block_forward.2} parent=11 // pred_region
        _
      $region16: #{block_forward.2} parent=11 // pred_fallthru
        _
      // Predicated region
      $region17: #{block_forward.2} parent=11 // pred_check
        %p143 = pneg %p78
      $region18: #{block_forward.2} parent=11 // pred_check_branch
        %145 = sbr.rel (%p143) target = $region20
      $region19: #{block_forward.2} parent=11 // pred_region
        _
      $region20: #{block_forward.2} parent=11 // pred_fallthru
        _
      // Predicated region
      $region21: #{block_forward.2} parent=11 // pred_check
        %p146 = pneg %p99
      $region22: #{block_forward.2} parent=11 // pred_check_branch
        %148 = sbr.rel (%p146) target = $region24
      $region23: #{block_forward.2} parent=11 // pred_region
        _
      $region24: #{block_forward.2} parent=11 // pred_fallthru
        _
    $region12: #{block_forward.2} parent=5 // pred_fallthru
      _
    %p149 = scmp.lt.s32.totalorder %s10, 2
    // Predicated region
    $region25: #{block_forward.2} parent=5 // pred_check
      %p150 = pneg %p149
    $region26: #{block_forward.2} parent=5 // pred_check_branch
      %152 = sbr.rel (%p150) target = $region28
    $region27: #{block_forward.2} parent=5 // pred_region
      // Predicated region
      $region29: #{block_forward.2} parent=27 // pred_check
        %p153 = pneg %p30
      $region30: #{block_forward.2} parent=27 // pred_check_branch
        %155 = sbr.rel (%p153) target = $region32
      $region31: #{block_forward.2} parent=27 // pred_region
        %s156 = smul.u32 32, %s10
        %p157 = scmp.lt.s32.totalorder %s156, 63
        %s158 = scalar_select %p157, %s156, 63
        %s159 = smul.addr %s158, 3
        %s160 = smul.addr %s159, 8
        %s161 = scalar_lea.vmem %s0, %s160
        %s162 = smul.u32 32, %s10
      $region32: #{block_forward.2} parent=27 // pred_fallthru
        _
    $region28: #{block_forward.2} parent=5 // pred_fallthru
      _
    %p163 = scmp.le.s32.totalorder 1, %s10
    %p164 = scmp.lt.s32.totalorder %s10, 3
    %p165 = pnand %p163, %p164
    %p166 = pneg %p165
    // Predicated region
    $region33: #{block_forward.2} parent=5 // pred_check
      _
    $region34: #{block_forward.2} parent=5 // pred_check_branch
      %168 = sbr.rel (%p165) target = $region36
    $region35: #{block_forward.2} parent=5 // pred_region
      %s169 = ssub.s32 %s10, 1
      %s170 = smul.u32 32, %s15
      %p171 = scmp.lt.s32.totalorder %s170, 63
      %s172 = scalar_select %p171, %s170, 63
      %s173 = smul.addr %s172, 3
      %s174 = smul.addr %s173, 8
      %s175 = scalar_lea.vmem %s0, %s174
      %p176 = pneg %p36
      %p177 = pneg %p33
      %p178 = pneg %p57
      %p179 = pneg %p54
      %p180 = pneg %p78
      %p181 = pneg %p75
      %p182 = pneg %p99
      %p183 = pneg %p96
      %p184 = pneg %p125
      %p185 = pneg %p122
      %s186 = smul.u32 32, %s15
      %p187 = scmp.lt.s32.totalorder %s186, 63
      %s188 = scalar_select %p187, %s186, 63
      %s189 = smul.addr %s188, 8
      %s190 = scalar_lea.vmem %s4, %s189
      %s191 = smul.u32 32, %s15
      %p192 = scmp.lt.s32.totalorder %s191, 63
      %s193 = scalar_select %p192, %s191, 63
      %s194 = smul.addr %s193, 3
      %s195 = smul.addr %s194, 8
      %s196 = scalar_lea.vmem %s0, %s195
      %s197 = smul.u32 32, %s15
      %s198 = smul.u32 32, %s15
      %p199 = scmp.lt.s32.totalorder %s198, 63
      %s200 = scalar_select %p199, %s198, 63
      %s201 = smul.addr %s200, 8
      %s202 = scalar_lea.vmem %s4, %s201
      %s203 = smul.u32 32, %s15
      %v204 = vld [vmem:[%s196] sm:$0xff]
      %v205 = vld [vmem:[%s196 + $0x8] sm:$0xff]
      %v206 = vld [vmem:[%s196 + $0x10] sm:$0xff]
      %v207 = vld [vmem:[%s196 + $0x18] sm:$0xff]
      %v208 = vld [vmem:[%s196 + $0x20] sm:$0xff]
      %v209 = vld [vmem:[%s196 + $0x28] sm:$0xff]
      %v210 = vld [vmem:[%s196 + $0x30] sm:$0xff]
      %v211 = vld [vmem:[%s196 + $0x38] sm:$0xff]
      %v212 = vld [vmem:[%s196 + $0x40] sm:$0xff]
      %v213 = vld [vmem:[%s196 + $0x48] sm:$0xff]
      %v214 = vld [vmem:[%s196 + $0x50] sm:$0xff]
      %v215 = vld [vmem:[%s196 + $0x58] sm:$0xff]
      %v216 = vld [vmem:[%s196 + $0x60] sm:$0xff]
      %v217 = vld [vmem:[%s196 + $0x68] sm:$0xff]
      %v218 = vld [vmem:[%s196 + $0x70] sm:$0xff]
      %v219 = vld [vmem:[%s196 + $0x78] sm:$0xff]
      %v220 = vld [vmem:[%s196 + $0x80] sm:$0xff]
      %v221 = vld [vmem:[%s196 + $0x88] sm:$0xff]
      %v222 = vld [vmem:[%s196 + $0x90] sm:$0xff]
      %v223 = vld [vmem:[%s196 + $0x98] sm:$0xff]
      %v224 = vld [vmem:[%s196 + $0xa0] sm:$0xff]
      %v225 = vld [vmem:[%s196 + $0xa8] sm:$0xff]
      %v226 = vld [vmem:[%s196 + $0xb0] sm:$0xff]
      %v227 = vld [vmem:[%s196 + $0xb8] sm:$0xff]
      %v228 = vld [vmem:[%s196 + $0xc0] sm:$0xff]
      %v229 = vld [vmem:[%s196 + $0xc8] sm:$0xff]
      %v230 = vld [vmem:[%s196 + $0xd0] sm:$0xff]
      %v231 = vld [vmem:[%s196 + $0xd8] sm:$0xff]
      %v232 = vld [vmem:[%s196 + $0xe0] sm:$0xff]
      %v233 = vld [vmem:[%s196 + $0xe8] sm:$0xff]
      %v234 = vld [vmem:[%s196 + $0xf0] sm:$0xff]
      %v235 = vld [vmem:[%s196 + $0xf8] sm:$0xff]
      %v236 = vld [vmem:[%s196 + $0x100] sm:$0xff]
      %v237 = vld [vmem:[%s196 + $0x108] sm:$0xff]
      %v238 = vld [vmem:[%s196 + $0x110] sm:$0xff]
      %v239 = vld [vmem:[%s196 + $0x118] sm:$0xff]
      %v240 = vld [vmem:[%s196 + $0x120] sm:$0xff]
      %v241 = vld [vmem:[%s196 + $0x128] sm:$0xff]
      %v242 = vld [vmem:[%s196 + $0x130] sm:$0xff]
      %v243 = vld [vmem:[%s196 + $0x138] sm:$0xff]
      %v244 = vld [vmem:[%s196 + $0x140] sm:$0xff]
      %v245 = vld [vmem:[%s196 + $0x148] sm:$0xff]
      %v246 = vld [vmem:[%s196 + $0x150] sm:$0xff]
      %v247 = vld [vmem:[%s196 + $0x158] sm:$0xff]
      %v248 = vld [vmem:[%s196 + $0x160] sm:$0xff]
      %v249 = vld [vmem:[%s196 + $0x168] sm:$0xff]
      %v250 = vld [vmem:[%s196 + $0x170] sm:$0xff]
      %v251 = vld [vmem:[%s196 + $0x178] sm:$0xff]
      %v252 = vld [vmem:[%s196 + $0x180] sm:$0xff]
      %v253 = vld [vmem:[%s196 + $0x188] sm:$0xff]
      %v254 = vld [vmem:[%s196 + $0x190] sm:$0xff]
      %v255 = vld [vmem:[%s196 + $0x198] sm:$0xff]
      %v256 = vld [vmem:[%s196 + $0x1a0] sm:$0xff]
      %v257 = vld [vmem:[%s196 + $0x1a8] sm:$0xff]
      %v258 = vld [vmem:[%s196 + $0x1b0] sm:$0xff]
      %v259 = vld [vmem:[%s196 + $0x1b8] sm:$0xff]
      %v260 = vld [vmem:[%s196 + $0x1c0] sm:$0xff]
      %v261 = vld [vmem:[%s196 + $0x1c8] sm:$0xff]
      %v262 = vld [vmem:[%s196 + $0x1d0] sm:$0xff]
      %v263 = vld [vmem:[%s196 + $0x1d8] sm:$0xff]
      %v264 = vld [vmem:[%s196 + $0x1e0] sm:$0xff]
      %v265 = vld [vmem:[%s196 + $0x1e8] sm:$0xff]
      %v266 = vld [vmem:[%s196 + $0x1f0] sm:$0xff]
      %v267 = vld [vmem:[%s196 + $0x1f8] sm:$0xff]
      %v268 = vld [vmem:[%s196 + $0x200] sm:$0xff]
      %v269 = vld [vmem:[%s196 + $0x208] sm:$0xff]
      %v270 = vld [vmem:[%s196 + $0x210] sm:$0xff]
      %v271 = vld [vmem:[%s196 + $0x218] sm:$0xff]
      %v272 = vld [vmem:[%s196 + $0x220] sm:$0xff]
      %v273 = vld [vmem:[%s196 + $0x228] sm:$0xff]
      %v274 = vld [vmem:[%s196 + $0x230] sm:$0xff]
      %v275 = vld [vmem:[%s196 + $0x238] sm:$0xff]
      %v276 = vld [vmem:[%s196 + $0x240] sm:$0xff]
      %v277 = vld [vmem:[%s196 + $0x248] sm:$0xff]
      %v278 = vld [vmem:[%s196 + $0x250] sm:$0xff]
      %v279 = vld [vmem:[%s196 + $0x258] sm:$0xff]
      %v280 = vld [vmem:[%s196 + $0x260] sm:$0xff]
      %v281 = vld [vmem:[%s196 + $0x268] sm:$0xff]
      %v282 = vld [vmem:[%s196 + $0x270] sm:$0xff]
      %v283 = vld [vmem:[%s196 + $0x278] sm:$0xff]
      %v284 = vld [vmem:[%s196 + $0x280] sm:$0xff]
      %v285 = vld [vmem:[%s196 + $0x288] sm:$0xff]
      %v286 = vld [vmem:[%s196 + $0x290] sm:$0xff]
      %v287 = vld [vmem:[%s196 + $0x298] sm:$0xff]
      %v288 = vld [vmem:[%s196 + $0x2a0] sm:$0xff]
      %v289 = vld [vmem:[%s196 + $0x2a8] sm:$0xff]
      %v290 = vld [vmem:[%s196 + $0x2b0] sm:$0xff]
      %v291 = vld [vmem:[%s196 + $0x2b8] sm:$0xff]
      %v292 = vld [vmem:[%s196 + $0x2c0] sm:$0xff]
      %v293 = vld [vmem:[%s196 + $0x2c8] sm:$0xff]
      %v294 = vld [vmem:[%s196 + $0x2d0] sm:$0xff]
      %v295 = vld [vmem:[%s196 + $0x2d8] sm:$0xff]
      %v296 = vld [vmem:[%s196 + $0x2e0] sm:$0xff]
      %v297 = vld [vmem:[%s196 + $0x2e8] sm:$0xff]
      %v298 = vld [vmem:[%s196 + $0x2f0] sm:$0xff]
      %v299 = vld [vmem:[%s196 + $0x2f8] sm:$0xff]
      %v300 = vld [vmem:[%s1] sm:$0xff]
      %v301 = vld [vmem:[%s1 + $0x8] sm:$0xff]
      %v302 = vld [vmem:[%s1 + $0x10] sm:$0xff]
      %v303 = vld [vmem:[%s1 + $0x18] sm:$0xff]
      %v304 = vld [vmem:[%s1 + $0x20] sm:$0xff]
      %v305 = vld [vmem:[%s1 + $0x28] sm:$0xff]
      %v306 = vld [vmem:[%s1 + $0x30] sm:$0xff]
      %v307 = vld [vmem:[%s1 + $0x38] sm:$0xff]
      %v308 = vld [vmem:[%s1 + $0x40] sm:$0xff]
      %v309 = vld [vmem:[%s1 + $0x48] sm:$0xff]
      %v310 = vld [vmem:[%s1 + $0x50] sm:$0xff]
      %v311 = vld [vmem:[%s1 + $0x58] sm:$0xff]
      %v312 = vld [vmem:[%s1 + $0x60] sm:$0xff]
      %v313 = vld [vmem:[%s1 + $0x68] sm:$0xff]
      %v314 = vld [vmem:[%s1 + $0x70] sm:$0xff]
      %v315 = vld [vmem:[%s1 + $0x78] sm:$0xff]
      %v316 = vld [vmem:[%s1 + $0x80] sm:$0xff]
      %v317 = vld [vmem:[%s1 + $0x88] sm:$0xff]
      %v318 = vld [vmem:[%s1 + $0x90] sm:$0xff]
      %v319 = vld [vmem:[%s1 + $0x98] sm:$0xff]
      %v320 = vld [vmem:[%s1 + $0xa0] sm:$0xff]
      %v321 = vld [vmem:[%s1 + $0xa8] sm:$0xff]
      %v322 = vld [vmem:[%s1 + $0xb0] sm:$0xff]
      %v323 = vld [vmem:[%s1 + $0xb8] sm:$0xff]
      %v324 = vld [vmem:[%s1 + $0xc0] sm:$0xff]
      %v325 = vld [vmem:[%s1 + $0xc8] sm:$0xff]
      %v326 = vld [vmem:[%s1 + $0xd0] sm:$0xff]
      %v327 = vld [vmem:[%s1 + $0xd8] sm:$0xff]
      %v328 = vld [vmem:[%s1 + $0xe0] sm:$0xff]
      %v329 = vld [vmem:[%s1 + $0xe8] sm:$0xff]
      %v330 = vld [vmem:[%s1 + $0xf0] sm:$0xff]
      %v331 = vld [vmem:[%s1 + $0xf8] sm:$0xff]
      %v332 = vld [vmem:[%s1 + $0x100] sm:$0xff]
      %v333 = vld [vmem:[%s1 + $0x108] sm:$0xff]
      %v334 = vld [vmem:[%s1 + $0x110] sm:$0xff]
      %v335 = vld [vmem:[%s1 + $0x118] sm:$0xff]
      %vm336 = vcmask 261120
      %v338 = vsel %vm336, %v206, 0
      %v341 = vsel %vm336, %v209, 0
      %v344 = vsel %vm336, %v212, 0
      %v347 = vsel %vm336, %v215, 0
      %v350 = vsel %vm336, %v218, 0
      %v353 = vsel %vm336, %v221, 0
      %v356 = vsel %vm336, %v224, 0
      %v359 = vsel %vm336, %v227, 0
      %v362 = vsel %vm336, %v230, 0
      %v365 = vsel %vm336, %v233, 0
      %v368 = vsel %vm336, %v236, 0
      %v371 = vsel %vm336, %v239, 0
      %v374 = vsel %vm336, %v242, 0
      %v377 = vsel %vm336, %v245, 0
      %v380 = vsel %vm336, %v248, 0
      %v383 = vsel %vm336, %v251, 0
      %v386 = vsel %vm336, %v254, 0
      %v389 = vsel %vm336, %v257, 0
      %v392 = vsel %vm336, %v260, 0
      %v395 = vsel %vm336, %v263, 0
      %v398 = vsel %vm336, %v266, 0
      %v401 = vsel %vm336, %v269, 0
      %v404 = vsel %vm336, %v272, 0
      %v407 = vsel %vm336, %v275, 0
      %v410 = vsel %vm336, %v278, 0
      %v413 = vsel %vm336, %v281, 0
      %v416 = vsel %vm336, %v284, 0
      %v419 = vsel %vm336, %v287, 0
      %v422 = vsel %vm336, %v290, 0
      %v425 = vsel %vm336, %v293, 0
      %v428 = vsel %vm336, %v296, 0
      %v431 = vsel %vm336, %v299, 0
      %433 = vmatpush.msra.mxu0 %v315
      %434 = vmatpush.msra.mxu0 %v314
      %435 = vmatpush.msra.mxu0 %v313
      %436 = vmatpush.msra.mxu0 %v312
      %437 = vmatpush.msra.mxu0 %v311
      %438 = vmatpush.msra.mxu0 %v310
      %439 = vmatpush.msra.mxu0 %v309
      %440 = vmatpush.msra.mxu0 %v308
      %441 = vmatpush.msra.mxu0 %v307
      %442 = vmatpush.msra.mxu0 %v306
      %443 = vmatpush.msra.mxu0 %v305
      %444 = vmatpush.msra.mxu0 %v304
      %445 = vmatpush.msra.mxu0 %v303
      %446 = vmatpush.msra.mxu0 %v302
      %447 = vmatpush.msra.mxu0 %v301
      %448 = vmatpush.msra.mxu0 %v300
      %449 = vmatmul.f32.gmra.mxu0 %v204
      %v450 = vpop.f32.mrf.mxu0
      %v451 = vadd.f32 0.0, %v450
      %452 = vmatmul.f32.gmra.mxu0 %v207
      %v453 = vpop.f32.mrf.mxu0
      %v454 = vadd.f32 0.0, %v453
      %455 = vmatmul.f32.gmra.mxu0 %v210
      %v456 = vpop.f32.mrf.mxu0
      %v457 = vadd.f32 0.0, %v456
      %458 = vmatmul.f32.gmra.mxu0 %v213
      %v459 = vpop.f32.mrf.mxu0
      %v460 = vadd.f32 0.0, %v459
      %461 = vmatmul.f32.gmra.mxu0 %v216
      %v462 = vpop.f32.mrf.mxu0
      %v463 = vadd.f32 0.0, %v462
      %464 = vmatmul.f32.gmra.mxu0 %v219
      %v465 = vpop.f32.mrf.mxu0
      %v466 = vadd.f32 0.0, %v465
      %467 = vmatmul.f32.gmra.mxu0 %v222
      %v468 = vpop.f32.mrf.mxu0
      %v469 = vadd.f32 0.0, %v468
      %470 = vmatmul.f32.gmra.mxu0 %v225
      %v471 = vpop.f32.mrf.mxu0
      %v472 = vadd.f32 0.0, %v471
      %473 = vmatmul.f32.gmra.mxu0 %v228
      %v474 = vpop.f32.mrf.mxu0
      %v475 = vadd.f32 0.0, %v474
      %476 = vmatmul.f32.gmra.mxu0 %v231
      %v477 = vpop.f32.mrf.mxu0
      %v478 = vadd.f32 0.0, %v477
      %479 = vmatmul.f32.gmra.mxu0 %v234
      %v480 = vpop.f32.mrf.mxu0
      %v481 = vadd.f32 0.0, %v480
      %482 = vmatmul.f32.gmra.mxu0 %v237
      %v483 = vpop.f32.mrf.mxu0
      %v484 = vadd.f32 0.0, %v483
      %485 = vmatmul.f32.gmra.mxu0 %v240
      %v486 = vpop.f32.mrf.mxu0
      %v487 = vadd.f32 0.0, %v486
      %488 = vmatmul.f32.gmra.mxu0 %v243
      %v489 = vpop.f32.mrf.mxu0
      %v490 = vadd.f32 0.0, %v489
      %491 = vmatmul.f32.gmra.mxu0 %v246
      %v492 = vpop.f32.mrf.mxu0
      %v493 = vadd.f32 0.0, %v492
      %494 = vmatmul.f32.gmra.mxu0 %v249
      %v495 = vpop.f32.mrf.mxu0
      %v496 = vadd.f32 0.0, %v495
      %497 = vmatmul.f32.gmra.mxu0 %v252
      %v498 = vpop.f32.mrf.mxu0
      %v499 = vadd.f32 0.0, %v498
      %500 = vmatmul.f32.gmra.mxu0 %v255
      %v501 = vpop.f32.mrf.mxu0
      %v502 = vadd.f32 0.0, %v501
      %503 = vmatmul.f32.gmra.mxu0 %v258
      %v504 = vpop.f32.mrf.mxu0
      %v505 = vadd.f32 0.0, %v504
      %506 = vmatmul.f32.gmra.mxu0 %v261
      %v507 = vpop.f32.mrf.mxu0
      %v508 = vadd.f32 0.0, %v507
      %509 = vmatmul.f32.gmra.mxu0 %v264
      %v510 = vpop.f32.mrf.mxu0
      %v511 = vadd.f32 0.0, %v510
      %512 = vmatmul.f32.gmra.mxu0 %v267
      %v513 = vpop.f32.mrf.mxu0
      %v514 = vadd.f32 0.0, %v513
      %515 = vmatmul.f32.gmra.mxu0 %v270
      %v516 = vpop.f32.mrf.mxu0
      %v517 = vadd.f32 0.0, %v516
      %518 = vmatmul.f32.gmra.mxu0 %v273
      %v519 = vpop.f32.mrf.mxu0
      %v520 = vadd.f32 0.0, %v519
      %521 = vmatmul.f32.gmra.mxu0 %v276
      %v522 = vpop.f32.mrf.mxu0
      %v523 = vadd.f32 0.0, %v522
      %524 = vmatmul.f32.gmra.mxu0 %v279
      %v525 = vpop.f32.mrf.mxu0
      %v526 = vadd.f32 0.0, %v525
      %527 = vmatmul.f32.gmra.mxu0 %v282
      %v528 = vpop.f32.mrf.mxu0
      %v529 = vadd.f32 0.0, %v528
      %530 = vmatmul.f32.gmra.mxu0 %v285
      %v531 = vpop.f32.mrf.mxu0
      %v532 = vadd.f32 0.0, %v531
      %533 = vmatmul.f32.gmra.mxu0 %v288
      %v534 = vpop.f32.mrf.mxu0
      %v535 = vadd.f32 0.0, %v534
      %536 = vmatmul.f32.gmra.mxu0 %v291
      %v537 = vpop.f32.mrf.mxu0
      %v538 = vadd.f32 0.0, %v537
      %539 = vmatmul.f32.gmra.mxu0 %v294
      %v540 = vpop.f32.mrf.mxu0
      %v541 = vadd.f32 0.0, %v540
      %542 = vmatmul.f32.gmra.mxu0 %v297
      %v543 = vpop.f32.mrf.mxu0
      %v544 = vadd.f32 0.0, %v543
      %545 = vdwg.mxu0
      %546 = vmatpush.msra.mxu0 %v331
      %547 = vmatpush.msra.mxu0 %v330
      %548 = vmatpush.msra.mxu0 %v329
      %549 = vmatpush.msra.mxu0 %v328
      %550 = vmatpush.msra.mxu0 %v327
      %551 = vmatpush.msra.mxu0 %v326
      %552 = vmatpush.msra.mxu0 %v325
      %553 = vmatpush.msra.mxu0 %v324
      %554 = vmatpush.msra.mxu0 %v323
      %555 = vmatpush.msra.mxu0 %v322
      %556 = vmatpush.msra.mxu0 %v321
      %557 = vmatpush.msra.mxu0 %v320
      %558 = vmatpush.msra.mxu0 %v319
      %559 = vmatpush.msra.mxu0 %v318
      %560 = vmatpush.msra.mxu0 %v317
      %561 = vmatpush.msra.mxu0 %v316
      %562 = vmatmul.f32.gmra.mxu0 %v205
      %v563 = vpop.f32.mrf.mxu0
      %v564 = vadd.f32 %v451, %v563
      %565 = vmatmul.f32.gmra.mxu0 %v208
      %v566 = vpop.f32.mrf.mxu0
      %v567 = vadd.f32 %v454, %v566
      %568 = vmatmul.f32.gmra.mxu0 %v211
      %v569 = vpop.f32.mrf.mxu0
      %v570 = vadd.f32 %v457, %v569
      %571 = vmatmul.f32.gmra.mxu0 %v214
      %v572 = vpop.f32.mrf.mxu0
      %v573 = vadd.f32 %v460, %v572
      %574 = vmatmul.f32.gmra.mxu0 %v217
      %v575 = vpop.f32.mrf.mxu0
      %v576 = vadd.f32 %v463, %v575
      %577 = vmatmul.f32.gmra.mxu0 %v220
      %v578 = vpop.f32.mrf.mxu0
      %v579 = vadd.f32 %v466, %v578
      %580 = vmatmul.f32.gmra.mxu0 %v223
      %v581 = vpop.f32.mrf.mxu0
      %v582 = vadd.f32 %v469, %v581
      %583 = vmatmul.f32.gmra.mxu0 %v226
      %v584 = vpop.f32.mrf.mxu0
      %v585 = vadd.f32 %v472, %v584
      %586 = vmatmul.f32.gmra.mxu0 %v229
      %v587 = vpop.f32.mrf.mxu0
      %v588 = vadd.f32 %v475, %v587
      %589 = vmatmul.f32.gmra.mxu0 %v232
      %v590 = vpop.f32.mrf.mxu0
      %v591 = vadd.f32 %v478, %v590
      %592 = vmatmul.f32.gmra.mxu0 %v235
      %v593 = vpop.f32.mrf.mxu0
      %v594 = vadd.f32 %v481, %v593
      %595 = vmatmul.f32.gmra.mxu0 %v238
      %v596 = vpop.f32.mrf.mxu0
      %v597 = vadd.f32 %v484, %v596
      %598 = vmatmul.f32.gmra.mxu0 %v241
      %v599 = vpop.f32.mrf.mxu0
      %v600 = vadd.f32 %v487, %v599
      %601 = vmatmul.f32.gmra.mxu0 %v244
      %v602 = vpop.f32.mrf.mxu0
      %v603 = vadd.f32 %v490, %v602
      %604 = vmatmul.f32.gmra.mxu0 %v247
      %v605 = vpop.f32.mrf.mxu0
      %v606 = vadd.f32 %v493, %v605
      %607 = vmatmul.f32.gmra.mxu0 %v250
      %v608 = vpop.f32.mrf.mxu0
      %v609 = vadd.f32 %v496, %v608
      %610 = vmatmul.f32.gmra.mxu0 %v253
      %v611 = vpop.f32.mrf.mxu0
      %v612 = vadd.f32 %v499, %v611
      %613 = vmatmul.f32.gmra.mxu0 %v256
      %v614 = vpop.f32.mrf.mxu0
      %v615 = vadd.f32 %v502, %v614
      %616 = vmatmul.f32.gmra.mxu0 %v259
      %v617 = vpop.f32.mrf.mxu0
      %v618 = vadd.f32 %v505, %v617
      %619 = vmatmul.f32.gmra.mxu0 %v262
      %v620 = vpop.f32.mrf.mxu0
      %v621 = vadd.f32 %v508, %v620
      %622 = vmatmul.f32.gmra.mxu0 %v265
      %v623 = vpop.f32.mrf.mxu0
      %v624 = vadd.f32 %v511, %v623
      %625 = vmatmul.f32.gmra.mxu0 %v268
      %v626 = vpop.f32.mrf.mxu0
      %v627 = vadd.f32 %v514, %v626
      %628 = vmatmul.f32.gmra.mxu0 %v271
      %v629 = vpop.f32.mrf.mxu0
      %v630 = vadd.f32 %v517, %v629
      %631 = vmatmul.f32.gmra.mxu0 %v274
      %v632 = vpop.f32.mrf.mxu0
      %v633 = vadd.f32 %v520, %v632
      %634 = vmatmul.f32.gmra.mxu0 %v277
      %v635 = vpop.f32.mrf.mxu0
      %v636 = vadd.f32 %v523, %v635
      %637 = vmatmul.f32.gmra.mxu0 %v280
      %v638 = vpop.f32.mrf.mxu0
      %v639 = vadd.f32 %v526, %v638
      %640 = vmatmul.f32.gmra.mxu0 %v283
      %v641 = vpop.f32.mrf.mxu0
      %v642 = vadd.f32 %v529, %v641
      %643 = vmatmul.f32.gmra.mxu0 %v286
      %v644 = vpop.f32.mrf.mxu0
      %v645 = vadd.f32 %v532, %v644
      %646 = vmatmul.f32.gmra.mxu0 %v289
      %v647 = vpop.f32.mrf.mxu0
      %v648 = vadd.f32 %v535, %v647
      %649 = vmatmul.f32.gmra.mxu0 %v292
      %v650 = vpop.f32.mrf.mxu0
      %v651 = vadd.f32 %v538, %v650
      %652 = vmatmul.f32.gmra.mxu0 %v295
      %v653 = vpop.f32.mrf.mxu0
      %v654 = vadd.f32 %v541, %v653
      %655 = vmatmul.f32.gmra.mxu0 %v298
      %v656 = vpop.f32.mrf.mxu0
      %v657 = vadd.f32 %v544, %v656
      %658 = vdwg.mxu0
      %659 = vmatpush.msra.mxu0 0.0
      %660 = vmatpush.msra.mxu0 0.0
      %661 = vmatpush.msra.mxu0 0.0
      %662 = vmatpush.msra.mxu0 0.0
      %663 = vmatpush.msra.mxu0 0.0
      %664 = vmatpush.msra.mxu0 0.0
      %665 = vmatpush.msra.mxu0 0.0
      %666 = vmatpush.msra.mxu0 0.0
      %667 = vmatpush.msra.mxu0 0.0
      %668 = vmatpush.msra.mxu0 0.0
      %669 = vmatpush.msra.mxu0 0.0
      %670 = vmatpush.msra.mxu0 0.0
      %671 = vmatpush.msra.mxu0 %v335
      %672 = vmatpush.msra.mxu0 %v334
      %673 = vmatpush.msra.mxu0 %v333
      %674 = vmatpush.msra.mxu0 %v332
      %675 = vmatmul.f32.gmra.mxu0 %v338
      %v676 = vpop.f32.mrf.mxu0
      %v677 = vadd.f32 %v564, %v676
      %678 = vmatmul.f32.gmra.mxu0 %v341
      %v679 = vpop.f32.mrf.mxu0
      %v680 = vadd.f32 %v567, %v679
      %681 = vmatmul.f32.gmra.mxu0 %v344
      %v682 = vpop.f32.mrf.mxu0
      %v683 = vadd.f32 %v570, %v682
      %684 = vmatmul.f32.gmra.mxu0 %v347
      %v685 = vpop.f32.mrf.mxu0
      %v686 = vadd.f32 %v573, %v685
      %687 = vmatmul.f32.gmra.mxu0 %v350
      %v688 = vpop.f32.mrf.mxu0
      %v689 = vadd.f32 %v576, %v688
      %690 = vmatmul.f32.gmra.mxu0 %v353
      %v691 = vpop.f32.mrf.mxu0
      %v692 = vadd.f32 %v579, %v691
      %693 = vmatmul.f32.gmra.mxu0 %v356
      %v694 = vpop.f32.mrf.mxu0
      %v695 = vadd.f32 %v582, %v694
      %696 = vmatmul.f32.gmra.mxu0 %v359
      %v697 = vpop.f32.mrf.mxu0
      %v698 = vadd.f32 %v585, %v697
      %699 = vmatmul.f32.gmra.mxu0 %v362
      %v700 = vpop.f32.mrf.mxu0
      %v701 = vadd.f32 %v588, %v700
      %702 = vmatmul.f32.gmra.mxu0 %v365
      %v703 = vpop.f32.mrf.mxu0
      %v704 = vadd.f32 %v591, %v703
      %705 = vmatmul.f32.gmra.mxu0 %v368
      %v706 = vpop.f32.mrf.mxu0
      %v707 = vadd.f32 %v594, %v706
      %708 = vmatmul.f32.gmra.mxu0 %v371
      %v709 = vpop.f32.mrf.mxu0
      %v710 = vadd.f32 %v597, %v709
      %711 = vmatmul.f32.gmra.mxu0 %v374
      %v712 = vpop.f32.mrf.mxu0
      %v713 = vadd.f32 %v600, %v712
      %714 = vmatmul.f32.gmra.mxu0 %v377
      %v715 = vpop.f32.mrf.mxu0
      %v716 = vadd.f32 %v603, %v715
      %717 = vmatmul.f32.gmra.mxu0 %v380
      %v718 = vpop.f32.mrf.mxu0
      %v719 = vadd.f32 %v606, %v718
      %720 = vmatmul.f32.gmra.mxu0 %v383
      %v721 = vpop.f32.mrf.mxu0
      %v722 = vadd.f32 %v609, %v721
      %723 = vmatmul.f32.gmra.mxu0 %v386
      %v724 = vpop.f32.mrf.mxu0
      %v725 = vadd.f32 %v612, %v724
      %726 = vmatmul.f32.gmra.mxu0 %v389
      %v727 = vpop.f32.mrf.mxu0
      %v728 = vadd.f32 %v615, %v727
      %729 = vmatmul.f32.gmra.mxu0 %v392
      %v730 = vpop.f32.mrf.mxu0
      %v731 = vadd.f32 %v618, %v730
      %732 = vmatmul.f32.gmra.mxu0 %v395
      %v733 = vpop.f32.mrf.mxu0
      %v734 = vadd.f32 %v621, %v733
      %735 = vmatmul.f32.gmra.mxu0 %v398
      %v736 = vpop.f32.mrf.mxu0
      %v737 = vadd.f32 %v624, %v736
      %738 = vmatmul.f32.gmra.mxu0 %v401
      %v739 = vpop.f32.mrf.mxu0
      %v740 = vadd.f32 %v627, %v739
      %741 = vmatmul.f32.gmra.mxu0 %v404
      %v742 = vpop.f32.mrf.mxu0
      %v743 = vadd.f32 %v630, %v742
      %744 = vmatmul.f32.gmra.mxu0 %v407
      %v745 = vpop.f32.mrf.mxu0
      %v746 = vadd.f32 %v633, %v745
      %747 = vmatmul.f32.gmra.mxu0 %v410
      %v748 = vpop.f32.mrf.mxu0
      %v749 = vadd.f32 %v636, %v748
      %750 = vmatmul.f32.gmra.mxu0 %v413
      %v751 = vpop.f32.mrf.mxu0
      %v752 = vadd.f32 %v639, %v751
      %753 = vmatmul.f32.gmra.mxu0 %v416
      %v754 = vpop.f32.mrf.mxu0
      %v755 = vadd.f32 %v642, %v754
      %756 = vmatmul.f32.gmra.mxu0 %v419
      %v757 = vpop.f32.mrf.mxu0
      %v758 = vadd.f32 %v645, %v757
      %759 = vmatmul.f32.gmra.mxu0 %v422
      %v760 = vpop.f32.mrf.mxu0
      %v761 = vadd.f32 %v648, %v760
      %762 = vmatmul.f32.gmra.mxu0 %v425
      %v763 = vpop.f32.mrf.mxu0
      %v764 = vadd.f32 %v651, %v763
      %765 = vmatmul.f32.gmra.mxu0 %v428
      %v766 = vpop.f32.mrf.mxu0
      %v767 = vadd.f32 %v654, %v766
      %768 = vmatmul.f32.gmra.mxu0 %v431
      %v769 = vpop.f32.mrf.mxu0
      %v770 = vadd.f32 %v657, %v769
      %771 = vdwg.mxu0
      %v772 = vld [vmem:[%s2] sm:$0x1]
      %v774 = vperm.slane %v772, 0
      %v776 = vmul.f32 %v677, %v774
      %v777 = vmul.f32 %v680, %v774
      %v778 = vmul.f32 %v683, %v774
      %v779 = vmul.f32 %v686, %v774
      %v780 = vmul.f32 %v689, %v774
      %v781 = vmul.f32 %v692, %v774
      %v782 = vmul.f32 %v695, %v774
      %v783 = vmul.f32 %v698, %v774
      %v784 = vmul.f32 %v701, %v774
      %v785 = vmul.f32 %v704, %v774
      %v786 = vmul.f32 %v707, %v774
      %v787 = vmul.f32 %v710, %v774
      %v788 = vmul.f32 %v713, %v774
      %v789 = vmul.f32 %v716, %v774
      %v790 = vmul.f32 %v719, %v774
      %v791 = vmul.f32 %v722, %v774
      %v792 = vmul.f32 %v725, %v774
      %v793 = vmul.f32 %v728, %v774
      %v794 = vmul.f32 %v731, %v774
      %v795 = vmul.f32 %v734, %v774
      %v796 = vmul.f32 %v737, %v774
      %v797 = vmul.f32 %v740, %v774
      %v798 = vmul.f32 %v743, %v774
      %v799 = vmul.f32 %v746, %v774
      %v800 = vmul.f32 %v749, %v774
      %v801 = vmul.f32 %v752, %v774
      %v802 = vmul.f32 %v755, %v774
      %v803 = vmul.f32 %v758, %v774
      %v804 = vmul.f32 %v761, %v774
      %v805 = vmul.f32 %v764, %v774
      %v806 = vmul.f32 %v767, %v774
      %v807 = vmul.f32 %v770, %v774
      %v808 = vld [vmem:[%s3] sm:$0x1]
      %v810 = vperm.slane %v808, 0
      %v812 = vadd.f32 %v776, %v810
      %v813 = vadd.f32 %v777, %v810
      %v814 = vadd.f32 %v778, %v810
      %v815 = vadd.f32 %v779, %v810
      %v816 = vadd.f32 %v780, %v810
      %v817 = vadd.f32 %v781, %v810
      %v818 = vadd.f32 %v782, %v810
      %v819 = vadd.f32 %v783, %v810
      %v820 = vadd.f32 %v784, %v810
      %v821 = vadd.f32 %v785, %v810
      %v822 = vadd.f32 %v786, %v810
      %v823 = vadd.f32 %v787, %v810
      %v824 = vadd.f32 %v788, %v810
      %v825 = vadd.f32 %v789, %v810
      %v826 = vadd.f32 %v790, %v810
      %v827 = vadd.f32 %v791, %v810
      %v828 = vadd.f32 %v792, %v810
      %v829 = vadd.f32 %v793, %v810
      %v830 = vadd.f32 %v794, %v810
      %v831 = vadd.f32 %v795, %v810
      %v832 = vadd.f32 %v796, %v810
      %v833 = vadd.f32 %v797, %v810
      %v834 = vadd.f32 %v798, %v810
      %v835 = vadd.f32 %v799, %v810
      %v836 = vadd.f32 %v800, %v810
      %v837 = vadd.f32 %v801, %v810
      %v838 = vadd.f32 %v802, %v810
      %v839 = vadd.f32 %v803, %v810
      %v840 = vadd.f32 %v804, %v810
      %v841 = vadd.f32 %v805, %v810
      %v842 = vadd.f32 %v806, %v810
      %v843 = vadd.f32 %v807, %v810
      %v844 = vmax.f32 %v812, 0.0
      %v845 = vmax.f32 %v813, 0.0
      %v846 = vmax.f32 %v814, 0.0
      %v847 = vmax.f32 %v815, 0.0
      %v848 = vmax.f32 %v816, 0.0
      %v849 = vmax.f32 %v817, 0.0
      %v850 = vmax.f32 %v818, 0.0
      %v851 = vmax.f32 %v819, 0.0
      %v852 = vmax.f32 %v820, 0.0
      %v853 = vmax.f32 %v821, 0.0
      %v854 = vmax.f32 %v822, 0.0
      %v855 = vmax.f32 %v823, 0.0
      %v856 = vmax.f32 %v824, 0.0
      %v857 = vmax.f32 %v825, 0.0
      %v858 = vmax.f32 %v826, 0.0
      %v859 = vmax.f32 %v827, 0.0
      %v860 = vmax.f32 %v828, 0.0
      %v861 = vmax.f32 %v829, 0.0
      %v862 = vmax.f32 %v830, 0.0
      %v863 = vmax.f32 %v831, 0.0
      %v864 = vmax.f32 %v832, 0.0
      %v865 = vmax.f32 %v833, 0.0
      %v866 = vmax.f32 %v834, 0.0
      %v867 = vmax.f32 %v835, 0.0
      %v868 = vmax.f32 %v836, 0.0
      %v869 = vmax.f32 %v837, 0.0
      %v870 = vmax.f32 %v838, 0.0
      %v871 = vmax.f32 %v839, 0.0
      %v872 = vmax.f32 %v840, 0.0
      %v873 = vmax.f32 %v841, 0.0
      %v874 = vmax.f32 %v842, 0.0
      %v875 = vmax.f32 %v843, 0.0
      %876 = vst.msk [vmem:[%s202] sm:$0xff] %vm336, %v844
      %877 = vst.msk [vmem:[%s202 + $0x8] sm:$0xff] %vm336, %v845
      %878 = vst.msk [vmem:[%s202 + $0x10] sm:$0xff] %vm336, %v846
      %879 = vst.msk [vmem:[%s202 + $0x18] sm:$0xff] %vm336, %v847
      %880 = vst.msk [vmem:[%s202 + $0x20] sm:$0xff] %vm336, %v848
      %881 = vst.msk [vmem:[%s202 + $0x28] sm:$0xff] %vm336, %v849
      %882 = vst.msk [vmem:[%s202 + $0x30] sm:$0xff] %vm336, %v850
      %883 = vst.msk [vmem:[%s202 + $0x38] sm:$0xff] %vm336, %v851
      %884 = vst.msk [vmem:[%s202 + $0x40] sm:$0xff] %vm336, %v852
      %885 = vst.msk [vmem:[%s202 + $0x48] sm:$0xff] %vm336, %v853
      %886 = vst.msk [vmem:[%s202 + $0x50] sm:$0xff] %vm336, %v854
      %887 = vst.msk [vmem:[%s202 + $0x58] sm:$0xff] %vm336, %v855
      %888 = vst.msk [vmem:[%s202 + $0x60] sm:$0xff] %vm336, %v856
      %889 = vst.msk [vmem:[%s202 + $0x68] sm:$0xff] %vm336, %v857
      %890 = vst.msk [vmem:[%s202 + $0x70] sm:$0xff] %vm336, %v858
      %891 = vst.msk [vmem:[%s202 + $0x78] sm:$0xff] %vm336, %v859
      %892 = vst.msk [vmem:[%s202 + $0x80] sm:$0xff] %vm336, %v860
      %893 = vst.msk [vmem:[%s202 + $0x88] sm:$0xff] %vm336, %v861
      %894 = vst.msk [vmem:[%s202 + $0x90] sm:$0xff] %vm336, %v862
      %895 = vst.msk [vmem:[%s202 + $0x98] sm:$0xff] %vm336, %v863
      %896 = vst.msk [vmem:[%s202 + $0xa0] sm:$0xff] %vm336, %v864
      %897 = vst.msk [vmem:[%s202 + $0xa8] sm:$0xff] %vm336, %v865
      %898 = vst.msk [vmem:[%s202 + $0xb0] sm:$0xff] %vm336, %v866
      %899 = vst.msk [vmem:[%s202 + $0xb8] sm:$0xff] %vm336, %v867
      %900 = vst.msk [vmem:[%s202 + $0xc0] sm:$0xff] %vm336, %v868
      %901 = vst.msk [vmem:[%s202 + $0xc8] sm:$0xff] %vm336, %v869
      %902 = vst.msk [vmem:[%s202 + $0xd0] sm:$0xff] %vm336, %v870
      %903 = vst.msk [vmem:[%s202 + $0xd8] sm:$0xff] %vm336, %v871
      %904 = vst.msk [vmem:[%s202 + $0xe0] sm:$0xff] %vm336, %v872
      %905 = vst.msk [vmem:[%s202 + $0xe8] sm:$0xff] %vm336, %v873
      %906 = vst.msk [vmem:[%s202 + $0xf0] sm:$0xff] %vm336, %v874
      %907 = vst.msk [vmem:[%s202 + $0xf8] sm:$0xff] %vm336, %v875
      %s908 = smul.u32 32, %s15
      %p909 = scmp.lt.s32.totalorder %s908, 63
      %s910 = scalar_select %p909, %s908, 63
      %s911 = smul.addr %s910, 8
      %s912 = scalar_lea.vmem %s4, %s911
      // Predicated region
      $region37: #{block_forward.2} parent=35 // pred_check
        %p913 = pneg %p122
      $region38: #{block_forward.2} parent=35 // pred_check_branch
        %915 = sbr.rel (%p913) target = $region40
      $region39: #{block_forward.2} parent=35 // pred_region
        %s916 = smul.u32 32, %s15
      $region40: #{block_forward.2} parent=35 // pred_fallthru
        _
    $region36: #{block_forward.2} parent=5 // pred_fallthru
      _
    %p917 = scmp.le.s32.totalorder 2, %s10
    // Predicated region
    $region41: #{block_forward.2} parent=5 // pred_check
      %p918 = pneg %p917
    $region42: #{block_forward.2} parent=5 // pred_check_branch
      %920 = sbr.rel (%p918) target = $region44
    $region43: #{block_forward.2} parent=5 // pred_region
      %s921 = ssub.s32 %s10, 2
      // Predicated region
      $region45: #{block_forward.2} parent=43 // pred_check
        %p922 = pneg %p128
      $region46: #{block_forward.2} parent=43 // pred_check_branch
        %924 = sbr.rel (%p922) target = $region48
      $region47: #{block_forward.2} parent=43 // pred_region
        %s925 = smul.u32 32, %s16
        %p926 = scmp.lt.s32.totalorder %s925, 63
        %s927 = scalar_select %p926, %s925, 63
        %s928 = smul.addr %s927, 8
        %s929 = scalar_lea.vmem %s4, %s928
      $region48: #{block_forward.2} parent=43 // pred_fallthru
        _
    $region44: #{block_forward.2} parent=5 // pred_fallthru
      _
  $region6: #{block_forward.2} parent=0 // loop_footer
    %s14 = sadd.s32 1, %s10
  $region7: #{block_forward.2} parent=0 // loop_footer_branch
    %9 = sbr.rel target = $region3
  $region8: #{block_forward.2} parent=0 // loop_exit
    _

// kernel: block_forward.3
$region0: #{block_forward.3}
  #allocation0 [shape = 'u32[]', space=smem, size = 0x4, offset = 0x4, fixed_abs, tag = 'smem constant byte address 0x4 - core index']
  #allocation1 [shape = 'u32[72,128]{1,0:T(1,128)}', space=vmem, size = 0x9000, scoped, tag = 'internal scratch']
  %s0 = inlined_call_operand.vmem [shape: f32[512,288], index: 0, kind: input, shape index: {}]
  %s1 = inlined_call_operand.vmem [shape: f32[288,32], index: 1, kind: input, shape index: {}]
  %s2 = inlined_call_operand.vmem [shape: f32[1,32], index: 2, kind: input, shape index: {}]
  %s3 = inlined_call_operand.vmem [shape: f32[1,32], index: 3, kind: input, shape index: {}]
  %s4 = inlined_call_operand.vmem [shape: f32[512,32], index: 4, kind: input, shape index: {}]
  %s5 = inlined_call_operand.hbm [shape: f32[512,32], index: 5, kind: output, shape index: {}]
  %s6 = sld [smem:[#allocation0]]
  $region53: #{block_forward.3} parent=0
    _
  %s8 = ssub.s32 1, %s6
  %s9 = scalar_select 0, %s8, %s6
  $region1: #{block_forward.3} parent=0
    #allocation2 [shape = 'u8[262144]{0}', space=vmem, size = 0x40000, scoped, tag = 'output window, operand 0']
    #allocation3 [shape = 's32[2]{0}', space=sflag, size = 0x8, scoped, tag = 'scoped memory for block_forward.3']
    %10 = vsyncpa [#allocation3], 0
    %s11 = scalar_lea.sflag [#allocation3], 1
    %12 = vsyncpa %s11, 0
    loop: start=0, step=1, limit=4
    $region2: #{block_forward.3} parent=1 // loop_pre_header
      _
    $region3: #{block_forward.3} parent=1 // loop_header
      %s14 = sphi 0, %s18
      %p15 = scmp.ge.s32.totalorder %s14, 4
      %s24 = sphi 0, %s26
      %s27 = sphi 0, %s24
      %s28 = sphi 0, %s27
      %s44 = sphi 0, %s28
      %s48 = sphi 0, %s48
      %s50 = sphi 0, %s48
      %s51 = sphi 0, %s50
      %s65 = sphi 0, %s51
      %s69 = sphi 0, %s69
      %s71 = sphi 0, %s69
      %s72 = sphi 0, %s71
      %s86 = sphi 0, %s72
      %s90 = sphi 0, %s90
      %s92 = sphi 0, %s90
      %s93 = sphi 0, %s92
      %s107 = sphi 0, %s93
      %s113 = sphi 0, %s115
      %s116 = sphi 0, %s113
      %s117 = sphi 0, %s116
      %s133 = sphi 0, %s117
      %s139 = sphi 0, %s141
      %s142 = sphi 0, %s139
      %s143 = sphi 0, %s142
      %s159 = sphi 0, %s143
    $region4: #{block_forward.3} parent=1 // loop_header_branch
      %17 = sbr.rel (%p15) target = $region8
    $region5: #{block_forward.3} parent=1 // loop_body
      %s19 = ssub.s32 %s14, 1
      %s20 = ssub.s32 %s14, 2
      %s21 = sadd.s32 %s14, 1
      %s22 = ssub.s32 %s14, %s21
      %p23 = scmp.eq.s32.totalorder %s22, 0
      %s25 = sadd.s32 %s24, 1
      %s26 = scalar_select %p23, %s24, %s25
      %p29 = pneg %p23
      %p30 = scmp.eq.s32.totalorder %s14, 1
      %p31 = por %p29, %p30
      %p32 = scmp.ne.s32.totalorder %s24, %s27
      %p33 = scmp.eq.s32.totalorder %s14, 0
      %p34 = por %p32, %p33
      %p35 = scmp.ne.s32.totalorder %s24, %s27
      %p36 = scmp.eq.s32.totalorder %s19, 1
      %p37 = por %p35, %p36
      %p38 = scmp.ne.s32.totalorder %s27, %s28
      %p39 = scmp.eq.s32.totalorder %s19, 0
      %p40 = por %p38, %p39
      %p41 = scmp.ne.s32.totalorder %s27, %s28
      %p42 = scmp.eq.s32.totalorder %s20, 1
      %p43 = por %p41, %p42
      %p45 = scmp.ne.s32.totalorder %s28, %s44
      %p46 = scmp.eq.s32.totalorder %s20, 0
      %p47 = por %p45, %p46
      %s49 = sadd.s32 %s48, 1
      %p52 = scmp.eq.s32.totalorder %s14, 1
      %p53 = scmp.ne.s32.totalorder %s48, %s50
      %p54 = scmp.eq.s32.totalorder %s14, 0
      %p55 = por %p53, %p54
      %p56 = scmp.ne.s32.totalorder %s48, %s50
      %p57 = scmp.eq.s32.totalorder %s19, 1
      %p58 = por %p56, %p57
      %p59 = scmp.ne.s32.totalorder %s50, %s51
      %p60 = scmp.eq.s32.totalorder %s19, 0
      %p61 = por %p59, %p60
      %p62 = scmp.ne.s32.totalorder %s50, %s51
      %p63 = scmp.eq.s32.totalorder %s20, 1
      %p64 = por %p62, %p63
      %p66 = scmp.ne.s32.totalorder %s51, %s65
      %p67 = scmp.eq.s32.totalorder %s20, 0
      %p68 = por %p66, %p67
      %s70 = sadd.s32 %s69, 1
      %p73 = scmp.eq.s32.totalorder %s14, 1
      %p74 = scmp.ne.s32.totalorder %s69, %s71
      %p75 = scmp.eq.s32.totalorder %s14, 0
      %p76 = por %p74, %p75
      %p77 = scmp.ne.s32.totalorder %s69, %s71
      %p78 = scmp.eq.s32.totalorder %s19, 1
      %p79 = por %p77, %p78
      %p80 = scmp.ne.s32.totalorder %s71, %s72
      %p81 = scmp.eq.s32.totalorder %s19, 0
      %p82 = por %p80, %p81
      %p83 = scmp.ne.s32.totalorder %s71, %s72
      %p84 = scmp.eq.s32.totalorder %s20, 1
      %p85 = por %p83, %p84
      %p87 = scmp.ne.s32.totalorder %s72, %s86
      %p88 = scmp.eq.s32.totalorder %s20, 0
      %p89 = por %p87, %p88
      %s91 = sadd.s32 %s90, 1
      %p94 = scmp.eq.s32.totalorder %s14, 1
      %p95 = scmp.ne.s32.totalorder %s90, %s92
      %p96 = scmp.eq.s32.totalorder %s14, 0
      %p97 = por %p95, %p96
      %p98 = scmp.ne.s32.totalorder %s90, %s92
      %p99 = scmp.eq.s32.totalorder %s19, 1
      %p100 = por %p98, %p99
      %p101 = scmp.ne.s32.totalorder %s92, %s93
      %p102 = scmp.eq.s32.totalorder %s19, 0
      %p103 = por %p101, %p102
      %p104 = scmp.ne.s32.totalorder %s92, %s93
      %p105 = scmp.eq.s32.totalorder %s20, 1
      %p106 = por %p104, %p105
      %p108 = scmp.ne.s32.totalorder %s93, %s107
      %p109 = scmp.eq.s32.totalorder %s20, 0
      %p110 = por %p108, %p109
      %s111 = ssub.s32 %s14, %s21
      %p112 = scmp.eq.s32.totalorder %s111, 0
      %s114 = sadd.s32 %s113, 1
      %s115 = scalar_select %p112, %s113, %s114
      %p118 = pneg %p112
      %p119 = scmp.eq.s32.totalorder %s14, 1
      %p120 = por %p118, %p119
      %p121 = scmp.ne.s32.totalorder %s113, %s116
      %p122 = scmp.eq.s32.totalorder %s14, 0
      %p123 = por %p121, %p122
      %p124 = scmp.ne.s32.totalorder %s113, %s116
      %p125 = scmp.eq.s32.totalorder %s19, 1
      %p126 = por %p124, %p125
      %p127 = scmp.ne.s32.totalorder %s116, %s117
      %p128 = scmp.eq.s32.totalorder %s19, 0
      %p129 = por %p127, %p128
      %p130 = scmp.ne.s32.totalorder %s116, %s117
      %p131 = scmp.eq.s32.totalorder %s20, 1
      %p132 = por %p130, %p131
      %p134 = scmp.ne.s32.totalorder %s117, %s133
      %p135 = scmp.eq.s32.totalorder %s20, 0
      %p136 = por %p134, %p135
      %s137 = ssub.s32 %s14, %s21
      %p138 = scmp.eq.s32.totalorder %s137, 0
      %s140 = sadd.s32 %s139, 1
      %s141 = scalar_select %p138, %s139, %s140
      %p144 = pneg %p138
      %p145 = scmp.eq.s32.totalorder %s14, 1
      %p146 = por %p144, %p145
      %p147 = scmp.ne.s32.totalorder %s139, %s142
      %p148 = scmp.eq.s32.totalorder %s14, 0
      %p149 = por %p147, %p148
      %p150 = scmp.ne.s32.totalorder %s139, %s142
      %p151 = scmp.eq.s32.totalorder %s19, 1
      %p152 = por %p150, %p151
      %p153 = scmp.ne.s32.totalorder %s142, %s143
      %p154 = scmp.eq.s32.totalorder %s19, 0
      %p155 = por %p153, %p154
      %p156 = scmp.ne.s32.totalorder %s142, %s143
      %p157 = scmp.eq.s32.totalorder %s20, 1
      %p158 = por %p156, %p157
      %p160 = scmp.ne.s32.totalorder %s143, %s159
      %p161 = scmp.eq.s32.totalorder %s20, 0
      %p162 = por %p160, %p161
      %p163 = scmp.le.s32.totalorder 1, %s14
      %p164 = scmp.lt.s32.totalorder %s14, 3
      %p165 = pnand %p163, %p164
      %p166 = pneg %p165
      // Predicated region
      $region9: #{block_forward.3} parent=5 // pred_check
        _
      $region10: #{block_forward.3} parent=5 // pred_check_branch
        %168 = sbr.rel (%p165) target = $region12
      $region11: #{block_forward.3} parent=5 // pred_region
        %s169 = ssub.s32 %s14, 1
        // Predicated region
        $region13: #{block_forward.3} parent=11 // pred_check
          %p170 = pneg %p61
        $region14: #{block_forward.3} parent=11 // pred_check_branch
          %172 = sbr.rel (%p170) target = $region16
        $region15: #{block_forward.3} parent=11 // pred_region
          _
        $region16: #{block_forward.3} parent=11 // pred_fallthru
          _
        // Predicated region
        $region17: #{block_forward.3} parent=11 // pred_check
          %p173 = pneg %p82
        $region18: #{block_forward.3} parent=11 // pred_check_branch
          %175 = sbr.rel (%p173) target = $region20
        $region19: #{block_forward.3} parent=11 // pred_region
          _
        $region20: #{block_forward.3} parent=11 // pred_fallthru
          _
        // Predicated region
        $region21: #{block_forward.3} parent=11 // pred_check
          %p176 = pneg %p103
        $region22: #{block_forward.3} parent=11 // pred_check_branch
          %178 = sbr.rel (%p176) target = $region24
        $region23: #{block_forward.3} parent=11 // pred_region
          _
        $region24: #{block_forward.3} parent=11 // pred_fallthru
          _
      $region12: #{block_forward.3} parent=5 // pred_fallthru
        _
      %p179 = scmp.lt.s32.totalorder %s14, 2
      // Predicated region
      $region25: #{block_forward.3} parent=5 // pred_check
        %p180 = pneg %p179
      $region26: #{block_forward.3} parent=5 // pred_check_branch
        %182 = sbr.rel (%p180) target = $region28
      $region27: #{block_forward.3} parent=5 // pred_region
        // Predicated region
        $region29: #{block_forward.3} parent=27 // pred_check
          %p183 = pneg %p34
        $region30: #{block_forward.3} parent=27 // pred_check_branch
          %185 = sbr.rel (%p183) target = $region32
        $region31: #{block_forward.3} parent=27 // pred_region
          %s186 = smul.u32 32, %s14
          %p187 = scmp.lt.s32.totalorder %s186, 63
          %s188 = scalar_select %p187, %s186, 63
          %s189 = smul.addr %s188, 3
          %s190 = smul.addr %s189, 8
          %s191 = scalar_lea.vmem %s0, %s190
          %s192 = smul.u32 32, %s14
        $region32: #{block_forward.3} parent=27 // pred_fallthru
          _
        // Predicated region
        $region33: #{block_forward.3} parent=27 // pred_check
          %p193 = pneg %p123
        $region34: #{block_forward.3} parent=27 // pred_check_branch
          %195 = sbr.rel (%p193) target = $region36
        $region35: #{block_forward.3} parent=27 // pred_region
          %s196 = smul.u32 32, %s14
          %p197 = scmp.lt.s32.totalorder %s196, 63
          %s198 = scalar_select %p197, %s196, 63
          %s199 = smul.addr %s198, 8
          %s200 = scalar_lea.vmem %s4, %s199
          %s201 = smul.u32 32, %s14
        $region36: #{block_forward.3} parent=27 // pred_fallthru
          _
      $region28: #{block_forward.3} parent=5 // pred_fallthru
        _
      %p202 = scmp.le.s32.totalorder 1, %s14
      %p203 = scmp.lt.s32.totalorder %s14, 3
      %p204 = pnand %p202, %p203
      %p205 = pneg %p204
      // Predicated region
      $region37: #{block_forward.3} parent=5 // pred_check
        _
      $region38: #{block_forward.3} parent=5 // pred_check_branch
        %207 = sbr.rel (%p204) target = $region40
      $region39: #{block_forward.3} parent=5 // pred_region
        %s208 = ssub.s32 %s14, 1
        %s209 = smul.u32 32, %s19
        %p210 = scmp.lt.s32.totalorder %s209, 63
        %s211 = scalar_select %p210, %s209, 63
        %s212 = smul.addr %s211, 3
        %s213 = smul.addr %s212, 8
        %s214 = scalar_lea.vmem %s0, %s213
        %p215 = pneg %p40
        %p216 = pneg %p37
        %p217 = pneg %p61
        %p218 = pneg %p58
        %p219 = pneg %p82
        %p220 = pneg %p79
        %p221 = pneg %p103
        %p222 = pneg %p100
        %s223 = smul.u32 32, %s19
        %p224 = scmp.lt.s32.totalorder %s223, 63
        %s225 = scalar_select %p224, %s223, 63
        %s226 = smul.addr %s225, 8
        %s227 = scalar_lea.vmem %s4, %s226
        %p228 = pneg %p129
        %p229 = pneg %p126
        %p230 = pneg %p155
        %p231 = pneg %p152
        %s232 = sand.u32 %s142, 1
        %s233 = scalar_lea.sflag [#allocation3], %s232
        %s234 = sand.u32 %s142, 1
        %s235 = smul.addr %s234, 256
        %s236 = scalar_lea.vmem [#allocation2], %s235
        %s237 = smul.u32 32, %s19
        %p238 = scmp.lt.s32.totalorder %s237, 63
        %s239 = scalar_select %p238, %s237, 63
        %s240 = smul.addr %s239, 3
        %s241 = smul.addr %s240, 8
        %s242 = scalar_lea.vmem %s0, %s241
        %s243 = smul.u32 32, %s19
        %s244 = smul.u32 32, %s19
        %p245 = scmp.lt.s32.totalorder %s244, 63
        %s246 = scalar_select %p245, %s244, 63
        %s247 = smul.addr %s246, 8
        %s248 = scalar_lea.vmem %s4, %s247
        %s249 = smul.u32 32, %s19
        %s250 = smul.u32 32, %s19
        %v251 = vld [vmem:[%s242] sm:$0xff]
        %v252 = vld [vmem:[%s242 + $0x8] sm:$0xff]
        %v253 = vld [vmem:[%s242 + $0x10] sm:$0xff]
        %v254 = vld [vmem:[%s242 + $0x18] sm:$0xff]
        %v255 = vld [vmem:[%s242 + $0x20] sm:$0xff]
        %v256 = vld [vmem:[%s242 + $0x28] sm:$0xff]
        %v257 = vld [vmem:[%s242 + $0x30] sm:$0xff]
        %v258 = vld [vmem:[%s242 + $0x38] sm:$0xff]
        %v259 = vld [vmem:[%s242 + $0x40] sm:$0xff]
        %v260 = vld [vmem:[%s242 + $0x48] sm:$0xff]
        %v261 = vld [vmem:[%s242 + $0x50] sm:$0xff]
        %v262 = vld [vmem:[%s242 + $0x58] sm:$0xff]
        %v263 = vld [vmem:[%s242 + $0x60] sm:$0xff]
        %v264 = vld [vmem:[%s242 + $0x68] sm:$0xff]
        %v265 = vld [vmem:[%s242 + $0x70] sm:$0xff]
        %v266 = vld [vmem:[%s242 + $0x78] sm:$0xff]
        %v267 = vld [vmem:[%s242 + $0x80] sm:$0xff]
        %v268 = vld [vmem:[%s242 + $0x88] sm:$0xff]
        %v269 = vld [vmem:[%s242 + $0x90] sm:$0xff]
        %v270 = vld [vmem:[%s242 + $0x98] sm:$0xff]
        %v271 = vld [vmem:[%s242 + $0xa0] sm:$0xff]
        %v272 = vld [vmem:[%s242 + $0xa8] sm:$0xff]
        %v273 = vld [vmem:[%s242 + $0xb0] sm:$0xff]
        %v274 = vld [vmem:[%s242 + $0xb8] sm:$0xff]
        %v275 = vld [vmem:[%s242 + $0xc0] sm:$0xff]
        %v276 = vld [vmem:[%s242 + $0xc8] sm:$0xff]
        %v277 = vld [vmem:[%s242 + $0xd0] sm:$0xff]
        %v278 = vld [vmem:[%s242 + $0xd8] sm:$0xff]
        %v279 = vld [vmem:[%s242 + $0xe0] sm:$0xff]
        %v280 = vld [vmem:[%s242 + $0xe8] sm:$0xff]
        %v281 = vld [vmem:[%s242 + $0xf0] sm:$0xff]
        %v282 = vld [vmem:[%s242 + $0xf8] sm:$0xff]
        %v283 = vld [vmem:[%s242 + $0x100] sm:$0xff]
        %v284 = vld [vmem:[%s242 + $0x108] sm:$0xff]
        %v285 = vld [vmem:[%s242 + $0x110] sm:$0xff]
        %v286 = vld [vmem:[%s242 + $0x118] sm:$0xff]
        %v287 = vld [vmem:[%s242 + $0x120] sm:$0xff]
        %v288 = vld [vmem:[%s242 + $0x128] sm:$0xff]
        %v289 = vld [vmem:[%s242 + $0x130] sm:$0xff]
        %v290 = vld [vmem:[%s242 + $0x138] sm:$0xff]
        %v291 = vld [vmem:[%s242 + $0x140] sm:$0xff]
        %v292 = vld [vmem:[%s242 + $0x148] sm:$0xff]
        %v293 = vld [vmem:[%s242 + $0x150] sm:$0xff]
        %v294 = vld [vmem:[%s242 + $0x158] sm:$0xff]
        %v295 = vld [vmem:[%s242 + $0x160] sm:$0xff]
        %v296 = vld [vmem:[%s242 + $0x168] sm:$0xff]
        %v297 = vld [vmem:[%s242 + $0x170] sm:$0xff]
        %v298 = vld [vmem:[%s242 + $0x178] sm:$0xff]
        %v299 = vld [vmem:[%s242 + $0x180] sm:$0xff]
        %v300 = vld [vmem:[%s242 + $0x188] sm:$0xff]
        %v301 = vld [vmem:[%s242 + $0x190] sm:$0xff]
        %v302 = vld [vmem:[%s242 + $0x198] sm:$0xff]
        %v303 = vld [vmem:[%s242 + $0x1a0] sm:$0xff]
        %v304 = vld [vmem:[%s242 + $0x1a8] sm:$0xff]
        %v305 = vld [vmem:[%s242 + $0x1b0] sm:$0xff]
        %v306 = vld [vmem:[%s242 + $0x1b8] sm:$0xff]
        %v307 = vld [vmem:[%s242 + $0x1c0] sm:$0xff]
        %v308 = vld [vmem:[%s242 + $0x1c8] sm:$0xff]
        %v309 = vld [vmem:[%s242 + $0x1d0] sm:$0xff]
        %v310 = vld [vmem:[%s242 + $0x1d8] sm:$0xff]
        %v311 = vld [vmem:[%s242 + $0x1e0] sm:$0xff]
        %v312 = vld [vmem:[%s242 + $0x1e8] sm:$0xff]
        %v313 = vld [vmem:[%s242 + $0x1f0] sm:$0xff]
        %v314 = vld [vmem:[%s242 + $0x1f8] sm:$0xff]
        %v315 = vld [vmem:[%s242 + $0x200] sm:$0xff]
        %v316 = vld [vmem:[%s242 + $0x208] sm:$0xff]
        %v317 = vld [vmem:[%s242 + $0x210] sm:$0xff]
        %v318 = vld [vmem:[%s242 + $0x218] sm:$0xff]
        %v319 = vld [vmem:[%s242 + $0x220] sm:$0xff]
        %v320 = vld [vmem:[%s242 + $0x228] sm:$0xff]
        %v321 = vld [vmem:[%s242 + $0x230] sm:$0xff]
        %v322 = vld [vmem:[%s242 + $0x238] sm:$0xff]
        %v323 = vld [vmem:[%s242 + $0x240] sm:$0xff]
        %v324 = vld [vmem:[%s242 + $0x248] sm:$0xff]
        %v325 = vld [vmem:[%s242 + $0x250] sm:$0xff]
        %v326 = vld [vmem:[%s242 + $0x258] sm:$0xff]
        %v327 = vld [vmem:[%s242 + $0x260] sm:$0xff]
        %v328 = vld [vmem:[%s242 + $0x268] sm:$0xff]
        %v329 = vld [vmem:[%s242 + $0x270] sm:$0xff]
        %v330 = vld [vmem:[%s242 + $0x278] sm:$0xff]
        %v331 = vld [vmem:[%s242 + $0x280] sm:$0xff]
        %v332 = vld [vmem:[%s242 + $0x288] sm:$0xff]
        %v333 = vld [vmem:[%s242 + $0x290] sm:$0xff]
        %v334 = vld [vmem:[%s242 + $0x298] sm:$0xff]
        %v335 = vld [vmem:[%s242 + $0x2a0] sm:$0xff]
        %v336 = vld [vmem:[%s242 + $0x2a8] sm:$0xff]
        %v337 = vld [vmem:[%s242 + $0x2b0] sm:$0xff]
        %v338 = vld [vmem:[%s242 + $0x2b8] sm:$0xff]
        %v339 = vld [vmem:[%s242 + $0x2c0] sm:$0xff]
        %v340 = vld [vmem:[%s242 + $0x2c8] sm:$0xff]
        %v341 = vld [vmem:[%s242 + $0x2d0] sm:$0xff]
        %v342 = vld [vmem:[%s242 + $0x2d8] sm:$0xff]
        %v343 = vld [vmem:[%s242 + $0x2e0] sm:$0xff]
        %v344 = vld [vmem:[%s242 + $0x2e8] sm:$0xff]
        %v345 = vld [vmem:[%s242 + $0x2f0] sm:$0xff]
        %v346 = vld [vmem:[%s242 + $0x2f8] sm:$0xff]
        %v347 = vld [vmem:[%s1] sm:$0xff]
        %v348 = vld [vmem:[%s1 + $0x8] sm:$0xff]
        %v349 = vld [vmem:[%s1 + $0x10] sm:$0xff]
        %v350 = vld [vmem:[%s1 + $0x18] sm:$0xff]
        %v351 = vld [vmem:[%s1 + $0x20] sm:$0xff]
        %v352 = vld [vmem:[%s1 + $0x28] sm:$0xff]
        %v353 = vld [vmem:[%s1 + $0x30] sm:$0xff]
        %v354 = vld [vmem:[%s1 + $0x38] sm:$0xff]
        %v355 = vld [vmem:[%s1 + $0x40] sm:$0xff]
        %v356 = vld [vmem:[%s1 + $0x48] sm:$0xff]
        %v357 = vld [vmem:[%s1 + $0x50] sm:$0xff]
        %v358 = vld [vmem:[%s1 + $0x58] sm:$0xff]
        %v359 = vld [vmem:[%s1 + $0x60] sm:$0xff]
        %v360 = vld [vmem:[%s1 + $0x68] sm:$0xff]
        %v361 = vld [vmem:[%s1 + $0x70] sm:$0xff]
        %v362 = vld [vmem:[%s1 + $0x78] sm:$0xff]
        %v363 = vld [vmem:[%s1 + $0x80] sm:$0xff]
        %v364 = vld [vmem:[%s1 + $0x88] sm:$0xff]
        %v365 = vld [vmem:[%s1 + $0x90] sm:$0xff]
        %v366 = vld [vmem:[%s1 + $0x98] sm:$0xff]
        %v367 = vld [vmem:[%s1 + $0xa0] sm:$0xff]
        %v368 = vld [vmem:[%s1 + $0xa8] sm:$0xff]
        %v369 = vld [vmem:[%s1 + $0xb0] sm:$0xff]
        %v370 = vld [vmem:[%s1 + $0xb8] sm:$0xff]
        %v371 = vld [vmem:[%s1 + $0xc0] sm:$0xff]
        %v372 = vld [vmem:[%s1 + $0xc8] sm:$0xff]
        %v373 = vld [vmem:[%s1 + $0xd0] sm:$0xff]
        %v374 = vld [vmem:[%s1 + $0xd8] sm:$0xff]
        %v375 = vld [vmem:[%s1 + $0xe0] sm:$0xff]
        %v376 = vld [vmem:[%s1 + $0xe8] sm:$0xff]
        %v377 = vld [vmem:[%s1 + $0xf0] sm:$0xff]
        %v378 = vld [vmem:[%s1 + $0xf8] sm:$0xff]
        %v379 = vld [vmem:[%s1 + $0x100] sm:$0xff]
        %v380 = vld [vmem:[%s1 + $0x108] sm:$0xff]
        %v381 = vld [vmem:[%s1 + $0x110] sm:$0xff]
        %v382 = vld [vmem:[%s1 + $0x118] sm:$0xff]
        %vm383 = vcmask 261120
        %v385 = vsel %vm383, %v253, 0
        %v388 = vsel %vm383, %v256, 0
        %v391 = vsel %vm383, %v259, 0
        %v394 = vsel %vm383, %v262, 0
        %v397 = vsel %vm383, %v265, 0
        %v400 = vsel %vm383, %v268, 0
        %v403 = vsel %vm383, %v271, 0
        %v406 = vsel %vm383, %v274, 0
        %v409 = vsel %vm383, %v277, 0
        %v412 = vsel %vm383, %v280, 0
        %v415 = vsel %vm383, %v283, 0
        %v418 = vsel %vm383, %v286, 0
        %v421 = vsel %vm383, %v289, 0
        %v424 = vsel %vm383, %v292, 0
        %v427 = vsel %vm383, %v295, 0
        %v430 = vsel %vm383, %v298, 0
        %v433 = vsel %vm383, %v301, 0
        %v436 = vsel %vm383, %v304, 0
        %v439 = vsel %vm383, %v307, 0
        %v442 = vsel %vm383, %v310, 0
        %v445 = vsel %vm383, %v313, 0
        %v448 = vsel %vm383, %v316, 0
        %v451 = vsel %vm383, %v319, 0
        %v454 = vsel %vm383, %v322, 0
        %v457 = vsel %vm383, %v325, 0
        %v460 = vsel %vm383, %v328, 0
        %v463 = vsel %vm383, %v331, 0
        %v466 = vsel %vm383, %v334, 0
        %v469 = vsel %vm383, %v337, 0
        %v472 = vsel %vm383, %v340, 0
        %v475 = vsel %vm383, %v343, 0
        %v478 = vsel %vm383, %v346, 0
        %480 = vmatpush.msra.mxu0 %v362
        %481 = vmatpush.msra.mxu0 %v361
        %482 = vmatpush.msra.mxu0 %v360
        %483 = vmatpush.msra.mxu0 %v359
        %484 = vmatpush.msra.mxu0 %v358
        %485 = vmatpush.msra.mxu0 %v357
        %486 = vmatpush.msra.mxu0 %v356
        %487 = vmatpush.msra.mxu0 %v355
        %488 = vmatpush.msra.mxu0 %v354
        %489 = vmatpush.msra.mxu0 %v353
        %490 = vmatpush.msra.mxu0 %v352
        %491 = vmatpush.msra.mxu0 %v351
        %492 = vmatpush.msra.mxu0 %v350
        %493 = vmatpush.msra.mxu0 %v349
        %494 = vmatpush.msra.mxu0 %v348
        %495 = vmatpush.msra.mxu0 %v347
        %496 = vmatmul.f32.gmra.mxu0 %v251
        %v497 = vpop.f32.mrf.mxu0
        %v498 = vadd.f32 0.0, %v497
        %499 = vmatmul.f32.gmra.mxu0 %v254
        %v500 = vpop.f32.mrf.mxu0
        %v501 = vadd.f32 0.0, %v500
        %502 = vmatmul.f32.gmra.mxu0 %v257
        %v503 = vpop.f32.mrf.mxu0
        %v504 = vadd.f32 0.0, %v503
        %505 = vmatmul.f32.gmra.mxu0 %v260
        %v506 = vpop.f32.mrf.mxu0
        %v507 = vadd.f32 0.0, %v506
        %508 = vmatmul.f32.gmra.mxu0 %v263
        %v509 = vpop.f32.mrf.mxu0
        %v510 = vadd.f32 0.0, %v509
        %511 = vmatmul.f32.gmra.mxu0 %v266
        %v512 = vpop.f32.mrf.mxu0
        %v513 = vadd.f32 0.0, %v512
        %514 = vmatmul.f32.gmra.mxu0 %v269
        %v515 = vpop.f32.mrf.mxu0
        %v516 = vadd.f32 0.0, %v515
        %517 = vmatmul.f32.gmra.mxu0 %v272
        %v518 = vpop.f32.mrf.mxu0
        %v519 = vadd.f32 0.0, %v518
        %520 = vmatmul.f32.gmra.mxu0 %v275
        %v521 = vpop.f32.mrf.mxu0
        %v522 = vadd.f32 0.0, %v521
        %523 = vmatmul.f32.gmra.mxu0 %v278
        %v524 = vpop.f32.mrf.mxu0
        %v525 = vadd.f32 0.0, %v524
        %526 = vmatmul.f32.gmra.mxu0 %v281
        %v527 = vpop.f32.mrf.mxu0
        %v528 = vadd.f32 0.0, %v527
        %529 = vmatmul.f32.gmra.mxu0 %v284
        %v530 = vpop.f32.mrf.mxu0
        %v531 = vadd.f32 0.0, %v530
        %532 = vmatmul.f32.gmra.mxu0 %v287
        %v533 = vpop.f32.mrf.mxu0
        %v534 = vadd.f32 0.0, %v533
        %535 = vmatmul.f32.gmra.mxu0 %v290
        %v536 = vpop.f32.mrf.mxu0
        %v537 = vadd.f32 0.0, %v536
        %538 = vmatmul.f32.gmra.mxu0 %v293
        %v539 = vpop.f32.mrf.mxu0
        %v540 = vadd.f32 0.0, %v539
        %541 = vmatmul.f32.gmra.mxu0 %v296
        %v542 = vpop.f32.mrf.mxu0
        %v543 = vadd.f32 0.0, %v542
        %544 = vmatmul.f32.gmra.mxu0 %v299
        %v545 = vpop.f32.mrf.mxu0
        %v546 = vadd.f32 0.0, %v545
        %547 = vmatmul.f32.gmra.mxu0 %v302
        %v548 = vpop.f32.mrf.mxu0
        %v549 = vadd.f32 0.0, %v548
        %550 = vmatmul.f32.gmra.mxu0 %v305
        %v551 = vpop.f32.mrf.mxu0
        %v552 = vadd.f32 0.0, %v551
        %553 = vmatmul.f32.gmra.mxu0 %v308
        %v554 = vpop.f32.mrf.mxu0
        %v555 = vadd.f32 0.0, %v554
        %556 = vmatmul.f32.gmra.mxu0 %v311
        %v557 = vpop.f32.mrf.mxu0
        %v558 = vadd.f32 0.0, %v557
        %559 = vmatmul.f32.gmra.mxu0 %v314
        %v560 = vpop.f32.mrf.mxu0
        %v561 = vadd.f32 0.0, %v560
        %562 = vmatmul.f32.gmra.mxu0 %v317
        %v563 = vpop.f32.mrf.mxu0
        %v564 = vadd.f32 0.0, %v563
        %565 = vmatmul.f32.gmra.mxu0 %v320
        %v566 = vpop.f32.mrf.mxu0
        %v567 = vadd.f32 0.0, %v566
        %568 = vmatmul.f32.gmra.mxu0 %v323
        %v569 = vpop.f32.mrf.mxu0
        %v570 = vadd.f32 0.0, %v569
        %571 = vmatmul.f32.gmra.mxu0 %v326
        %v572 = vpop.f32.mrf.mxu0
        %v573 = vadd.f32 0.0, %v572
        %574 = vmatmul.f32.gmra.mxu0 %v329
        %v575 = vpop.f32.mrf.mxu0
        %v576 = vadd.f32 0.0, %v575
        %577 = vmatmul.f32.gmra.mxu0 %v332
        %v578 = vpop.f32.mrf.mxu0
        %v579 = vadd.f32 0.0, %v578
        %580 = vmatmul.f32.gmra.mxu0 %v335
        %v581 = vpop.f32.mrf.mxu0
        %v582 = vadd.f32 0.0, %v581
        %583 = vmatmul.f32.gmra.mxu0 %v338
        %v584 = vpop.f32.mrf.mxu0
        %v585 = vadd.f32 0.0, %v584
        %586 = vmatmul.f32.gmra.mxu0 %v341
        %v587 = vpop.f32.mrf.mxu0
        %v588 = vadd.f32 0.0, %v587
        %589 = vmatmul.f32.gmra.mxu0 %v344
        %v590 = vpop.f32.mrf.mxu0
        %v591 = vadd.f32 0.0, %v590
        %592 = vdwg.mxu0
        %593 = vmatpush.msra.mxu0 %v378
        %594 = vmatpush.msra.mxu0 %v377
        %595 = vmatpush.msra.mxu0 %v376
        %596 = vmatpush.msra.mxu0 %v375
        %597 = vmatpush.msra.mxu0 %v374
        %598 = vmatpush.msra.mxu0 %v373
        %599 = vmatpush.msra.mxu0 %v372
        %600 = vmatpush.msra.mxu0 %v371
        %601 = vmatpush.msra.mxu0 %v370
        %602 = vmatpush.msra.mxu0 %v369
        %603 = vmatpush.msra.mxu0 %v368
        %604 = vmatpush.msra.mxu0 %v367
        %605 = vmatpush.msra.mxu0 %v366
        %606 = vmatpush.msra.mxu0 %v365
        %607 = vmatpush.msra.mxu0 %v364
        %608 = vmatpush.msra.mxu0 %v363
        %609 = vmatmul.f32.gmra.mxu0 %v252
        %v610 = vpop.f32.mrf.mxu0
        %v611 = vadd.f32 %v498, %v610
        %612 = vmatmul.f32.gmra.mxu0 %v255
        %v613 = vpop.f32.mrf.mxu0
        %v614 = vadd.f32 %v501, %v613
        %615 = vmatmul.f32.gmra.mxu0 %v258
        %v616 = vpop.f32.mrf.mxu0
        %v617 = vadd.f32 %v504, %v616
        %618 = vmatmul.f32.gmra.mxu0 %v261
        %v619 = vpop.f32.mrf.mxu0
        %v620 = vadd.f32 %v507, %v619
        %621 = vmatmul.f32.gmra.mxu0 %v264
        %v622 = vpop.f32.mrf.mxu0
        %v623 = vadd.f32 %v510, %v622
        %624 = vmatmul.f32.gmra.mxu0 %v267
        %v625 = vpop.f32.mrf.mxu0
        %v626 = vadd.f32 %v513, %v625
        %627 = vmatmul.f32.gmra.mxu0 %v270
        %v628 = vpop.f32.mrf.mxu0
        %v629 = vadd.f32 %v516, %v628
        %630 = vmatmul.f32.gmra.mxu0 %v273
        %v631 = vpop.f32.mrf.mxu0
        %v632 = vadd.f32 %v519, %v631
        %633 = vmatmul.f32.gmra.mxu0 %v276
        %v634 = vpop.f32.mrf.mxu0
        %v635 = vadd.f32 %v522, %v634
        %636 = vmatmul.f32.gmra.mxu0 %v279
        %v637 = vpop.f32.mrf.mxu0
        %v638 = vadd.f32 %v525, %v637
        %639 = vmatmul.f32.gmra.mxu0 %v282
        %v640 = vpop.f32.mrf.mxu0
        %v641 = vadd.f32 %v528, %v640
        %642 = vmatmul.f32.gmra.mxu0 %v285
        %v643 = vpop.f32.mrf.mxu0
        %v644 = vadd.f32 %v531, %v643
        %645 = vmatmul.f32.gmra.mxu0 %v288
        %v646 = vpop.f32.mrf.mxu0
        %v647 = vadd.f32 %v534, %v646
        %648 = vmatmul.f32.gmra.mxu0 %v291
        %v649 = vpop.f32.mrf.mxu0
        %v650 = vadd.f32 %v537, %v649
        %651 = vmatmul.f32.gmra.mxu0 %v294
        %v652 = vpop.f32.mrf.mxu0
        %v653 = vadd.f32 %v540, %v652
        %654 = vmatmul.f32.gmra.mxu0 %v297
        %v655 = vpop.f32.mrf.mxu0
        %v656 = vadd.f32 %v543, %v655
        %657 = vmatmul.f32.gmra.mxu0 %v300
        %v658 = vpop.f32.mrf.mxu0
        %v659 = vadd.f32 %v546, %v658
        %660 = vmatmul.f32.gmra.mxu0 %v303
        %v661 = vpop.f32.mrf.mxu0
        %v662 = vadd.f32 %v549, %v661
        %663 = vmatmul.f32.gmra.mxu0 %v306
        %v664 = vpop.f32.mrf.mxu0
        %v665 = vadd.f32 %v552, %v664
        %666 = vmatmul.f32.gmra.mxu0 %v309
        %v667 = vpop.f32.mrf.mxu0
        %v668 = vadd.f32 %v555, %v667
        %669 = vmatmul.f32.gmra.mxu0 %v312
        %v670 = vpop.f32.mrf.mxu0
        %v671 = vadd.f32 %v558, %v670
        %672 = vmatmul.f32.gmra.mxu0 %v315
        %v673 = vpop.f32.mrf.mxu0
        %v674 = vadd.f32 %v561, %v673
        %675 = vmatmul.f32.gmra.mxu0 %v318
        %v676 = vpop.f32.mrf.mxu0
        %v677 = vadd.f32 %v564, %v676
        %678 = vmatmul.f32.gmra.mxu0 %v321
        %v679 = vpop.f32.mrf.mxu0
        %v680 = vadd.f32 %v567, %v679
        %681 = vmatmul.f32.gmra.mxu0 %v324
        %v682 = vpop.f32.mrf.mxu0
        %v683 = vadd.f32 %v570, %v682
        %684 = vmatmul.f32.gmra.mxu0 %v327
        %v685 = vpop.f32.mrf.mxu0
        %v686 = vadd.f32 %v573, %v685
        %687 = vmatmul.f32.gmra.mxu0 %v330
        %v688 = vpop.f32.mrf.mxu0
        %v689 = vadd.f32 %v576, %v688
        %690 = vmatmul.f32.gmra.mxu0 %v333
        %v691 = vpop.f32.mrf.mxu0
        %v692 = vadd.f32 %v579, %v691
        %693 = vmatmul.f32.gmra.mxu0 %v336
        %v694 = vpop.f32.mrf.mxu0
        %v695 = vadd.f32 %v582, %v694
        %696 = vmatmul.f32.gmra.mxu0 %v339
        %v697 = vpop.f32.mrf.mxu0
        %v698 = vadd.f32 %v585, %v697
        %699 = vmatmul.f32.gmra.mxu0 %v342
        %v700 = vpop.f32.mrf.mxu0
        %v701 = vadd.f32 %v588, %v700
        %702 = vmatmul.f32.gmra.mxu0 %v345
        %v703 = vpop.f32.mrf.mxu0
        %v704 = vadd.f32 %v591, %v703
        %705 = vdwg.mxu0
        %706 = vmatpush.msra.mxu0 0.0
        %707 = vmatpush.msra.mxu0 0.0
        %708 = vmatpush.msra.mxu0 0.0
        %709 = vmatpush.msra.mxu0 0.0
        %710 = vmatpush.msra.mxu0 0.0
        %711 = vmatpush.msra.mxu0 0.0
        %712 = vmatpush.msra.mxu0 0.0
        %713 = vmatpush.msra.mxu0 0.0
        %714 = vmatpush.msra.mxu0 0.0
        %715 = vmatpush.msra.mxu0 0.0
        %716 = vmatpush.msra.mxu0 0.0
        %717 = vmatpush.msra.mxu0 0.0
        %718 = vmatpush.msra.mxu0 %v382
        %719 = vmatpush.msra.mxu0 %v381
        %720 = vmatpush.msra.mxu0 %v380
        %721 = vmatpush.msra.mxu0 %v379
        %722 = vmatmul.f32.gmra.mxu0 %v385
        %v723 = vpop.f32.mrf.mxu0
        %v724 = vadd.f32 %v611, %v723
        %725 = vmatmul.f32.gmra.mxu0 %v388
        %v726 = vpop.f32.mrf.mxu0
        %v727 = vadd.f32 %v614, %v726
        %728 = vmatmul.f32.gmra.mxu0 %v391
        %v729 = vpop.f32.mrf.mxu0
        %v730 = vadd.f32 %v617, %v729
        %731 = vmatmul.f32.gmra.mxu0 %v394
        %v732 = vpop.f32.mrf.mxu0
        %v733 = vadd.f32 %v620, %v732
        %734 = vmatmul.f32.gmra.mxu0 %v397
        %v735 = vpop.f32.mrf.mxu0
        %v736 = vadd.f32 %v623, %v735
        %737 = vmatmul.f32.gmra.mxu0 %v400
        %v738 = vpop.f32.mrf.mxu0
        %v739 = vadd.f32 %v626, %v738
        %740 = vmatmul.f32.gmra.mxu0 %v403
        %v741 = vpop.f32.mrf.mxu0
        %v742 = vadd.f32 %v629, %v741
        %743 = vmatmul.f32.gmra.mxu0 %v406
        %v744 = vpop.f32.mrf.mxu0
        %v745 = vadd.f32 %v632, %v744
        %746 = vmatmul.f32.gmra.mxu0 %v409
        %v747 = vpop.f32.mrf.mxu0
        %v748 = vadd.f32 %v635, %v747
        %749 = vmatmul.f32.gmra.mxu0 %v412
        %v750 = vpop.f32.mrf.mxu0
        %v751 = vadd.f32 %v638, %v750
        %752 = vmatmul.f32.gmra.mxu0 %v415
        %v753 = vpop.f32.mrf.mxu0
        %v754 = vadd.f32 %v641, %v753
        %755 = vmatmul.f32.gmra.mxu0 %v418
        %v756 = vpop.f32.mrf.mxu0
        %v757 = vadd.f32 %v644, %v756
        %758 = vmatmul.f32.gmra.mxu0 %v421
        %v759 = vpop.f32.mrf.mxu0
        %v760 = vadd.f32 %v647, %v759
        %761 = vmatmul.f32.gmra.mxu0 %v424
        %v762 = vpop.f32.mrf.mxu0
        %v763 = vadd.f32 %v650, %v762
        %764 = vmatmul.f32.gmra.mxu0 %v427
        %v765 = vpop.f32.mrf.mxu0
        %v766 = vadd.f32 %v653, %v765
        %767 = vmatmul.f32.gmra.mxu0 %v430
        %v768 = vpop.f32.mrf.mxu0
        %v769 = vadd.f32 %v656, %v768
        %770 = vmatmul.f32.gmra.mxu0 %v433
        %v771 = vpop.f32.mrf.mxu0
        %v772 = vadd.f32 %v659, %v771
        %773 = vmatmul.f32.gmra.mxu0 %v436
        %v774 = vpop.f32.mrf.mxu0
        %v775 = vadd.f32 %v662, %v774
        %776 = vmatmul.f32.gmra.mxu0 %v439
        %v777 = vpop.f32.mrf.mxu0
        %v778 = vadd.f32 %v665, %v777
        %779 = vmatmul.f32.gmra.mxu0 %v442
        %v780 = vpop.f32.mrf.mxu0
        %v781 = vadd.f32 %v668, %v780
        %782 = vmatmul.f32.gmra.mxu0 %v445
        %v783 = vpop.f32.mrf.mxu0
        %v784 = vadd.f32 %v671, %v783
        %785 = vmatmul.f32.gmra.mxu0 %v448
        %v786 = vpop.f32.mrf.mxu0
        %v787 = vadd.f32 %v674, %v786
        %788 = vmatmul.f32.gmra.mxu0 %v451
        %v789 = vpop.f32.mrf.mxu0
        %v790 = vadd.f32 %v677, %v789
        %791 = vmatmul.f32.gmra.mxu0 %v454
        %v792 = vpop.f32.mrf.mxu0
        %v793 = vadd.f32 %v680, %v792
        %794 = vmatmul.f32.gmra.mxu0 %v457
        %v795 = vpop.f32.mrf.mxu0
        %v796 = vadd.f32 %v683, %v795
        %797 = vmatmul.f32.gmra.mxu0 %v460
        %v798 = vpop.f32.mrf.mxu0
        %v799 = vadd.f32 %v686, %v798
        %800 = vmatmul.f32.gmra.mxu0 %v463
        %v801 = vpop.f32.mrf.mxu0
        %v802 = vadd.f32 %v689, %v801
        %803 = vmatmul.f32.gmra.mxu0 %v466
        %v804 = vpop.f32.mrf.mxu0
        %v805 = vadd.f32 %v692, %v804
        %806 = vmatmul.f32.gmra.mxu0 %v469
        %v807 = vpop.f32.mrf.mxu0
        %v808 = vadd.f32 %v695, %v807
        %809 = vmatmul.f32.gmra.mxu0 %v472
        %v810 = vpop.f32.mrf.mxu0
        %v811 = vadd.f32 %v698, %v810
        %812 = vmatmul.f32.gmra.mxu0 %v475
        %v813 = vpop.f32.mrf.mxu0
        %v814 = vadd.f32 %v701, %v813
        %815 = vmatmul.f32.gmra.mxu0 %v478
        %v816 = vpop.f32.mrf.mxu0
        %v817 = vadd.f32 %v704, %v816
        %818 = vdwg.mxu0
        %v819 = vld [vmem:[%s2] sm:$0x1]
        %v821 = vperm.slane %v819, 0
        %v823 = vmul.f32 %v724, %v821
        %v824 = vmul.f32 %v727, %v821
        %v825 = vmul.f32 %v730, %v821
        %v826 = vmul.f32 %v733, %v821
        %v827 = vmul.f32 %v736, %v821
        %v828 = vmul.f32 %v739, %v821
        %v829 = vmul.f32 %v742, %v821
        %v830 = vmul.f32 %v745, %v821
        %v831 = vmul.f32 %v748, %v821
        %v832 = vmul.f32 %v751, %v821
        %v833 = vmul.f32 %v754, %v821
        %v834 = vmul.f32 %v757, %v821
        %v835 = vmul.f32 %v760, %v821
        %v836 = vmul.f32 %v763, %v821
        %v837 = vmul.f32 %v766, %v821
        %v838 = vmul.f32 %v769, %v821
        %v839 = vmul.f32 %v772, %v821
        %v840 = vmul.f32 %v775, %v821
        %v841 = vmul.f32 %v778, %v821
        %v842 = vmul.f32 %v781, %v821
        %v843 = vmul.f32 %v784, %v821
        %v844 = vmul.f32 %v787, %v821
        %v845 = vmul.f32 %v790, %v821
        %v846 = vmul.f32 %v793, %v821
        %v847 = vmul.f32 %v796, %v821
        %v848 = vmul.f32 %v799, %v821
        %v849 = vmul.f32 %v802, %v821
        %v850 = vmul.f32 %v805, %v821
        %v851 = vmul.f32 %v808, %v821
        %v852 = vmul.f32 %v811, %v821
        %v853 = vmul.f32 %v814, %v821
        %v854 = vmul.f32 %v817, %v821
        %v855 = vld [vmem:[%s3] sm:$0x1]
        %v857 = vperm.slane %v855, 0
        %v859 = vadd.f32 %v823, %v857
        %v860 = vadd.f32 %v824, %v857
        %v861 = vadd.f32 %v825, %v857
        %v862 = vadd.f32 %v826, %v857
        %v863 = vadd.f32 %v827, %v857
        %v864 = vadd.f32 %v828, %v857
        %v865 = vadd.f32 %v829, %v857
        %v866 = vadd.f32 %v830, %v857
        %v867 = vadd.f32 %v831, %v857
        %v868 = vadd.f32 %v832, %v857
        %v869 = vadd.f32 %v833, %v857
        %v870 = vadd.f32 %v834, %v857
        %v871 = vadd.f32 %v835, %v857
        %v872 = vadd.f32 %v836, %v857
        %v873 = vadd.f32 %v837, %v857
        %v874 = vadd.f32 %v838, %v857
        %v875 = vadd.f32 %v839, %v857
        %v876 = vadd.f32 %v840, %v857
        %v877 = vadd.f32 %v841, %v857
        %v878 = vadd.f32 %v842, %v857
        %v879 = vadd.f32 %v843, %v857
        %v880 = vadd.f32 %v844, %v857
        %v881 = vadd.f32 %v845, %v857
        %v882 = vadd.f32 %v846, %v857
        %v883 = vadd.f32 %v847, %v857
        %v884 = vadd.f32 %v848, %v857
        %v885 = vadd.f32 %v849, %v857
        %v886 = vadd.f32 %v850, %v857
        %v887 = vadd.f32 %v851, %v857
        %v888 = vadd.f32 %v852, %v857
        %v889 = vadd.f32 %v853, %v857
        %v890 = vadd.f32 %v854, %v857
        %v891 = vld [vmem:[%s248] sm:$0xff]
        %v892 = vld [vmem:[%s248 + $0x8] sm:$0xff]
        %v893 = vld [vmem:[%s248 + $0x10] sm:$0xff]
        %v894 = vld [vmem:[%s248 + $0x18] sm:$0xff]
        %v895 = vld [vmem:[%s248 + $0x20] sm:$0xff]
        %v896 = vld [vmem:[%s248 + $0x28] sm:$0xff]
        %v897 = vld [vmem:[%s248 + $0x30] sm:$0xff]
        %v898 = vld [vmem:[%s248 + $0x38] sm:$0xff]
        %v899 = vld [vmem:[%s248 + $0x40] sm:$0xff]
        %v900 = vld [vmem:[%s248 + $0x48] sm:$0xff]
        %v901 = vld [vmem:[%s248 + $0x50] sm:$0xff]
        %v902 = vld [vmem:[%s248 + $0x58] sm:$0xff]
        %v903 = vld [vmem:[%s248 + $0x60] sm:$0xff]
        %v904 = vld [vmem:[%s248 + $0x68] sm:$0xff]
        %v905 = vld [vmem:[%s248 + $0x70] sm:$0xff]
        %v906 = vld [vmem:[%s248 + $0x78] sm:$0xff]
        %v907 = vld [vmem:[%s248 + $0x80] sm:$0xff]
        %v908 = vld [vmem:[%s248 + $0x88] sm:$0xff]
        %v909 = vld [vmem:[%s248 + $0x90] sm:$0xff]
        %v910 = vld [vmem:[%s248 + $0x98] sm:$0xff]
        %v911 = vld [vmem:[%s248 + $0xa0] sm:$0xff]
        %v912 = vld [vmem:[%s248 + $0xa8] sm:$0xff]
        %v913 = vld [vmem:[%s248 + $0xb0] sm:$0xff]
        %v914 = vld [vmem:[%s248 + $0xb8] sm:$0xff]
        %v915 = vld [vmem:[%s248 + $0xc0] sm:$0xff]
        %v916 = vld [vmem:[%s248 + $0xc8] sm:$0xff]
        %v917 = vld [vmem:[%s248 + $0xd0] sm:$0xff]
        %v918 = vld [vmem:[%s248 + $0xd8] sm:$0xff]
        %v919 = vld [vmem:[%s248 + $0xe0] sm:$0xff]
        %v920 = vld [vmem:[%s248 + $0xe8] sm:$0xff]
        %v921 = vld [vmem:[%s248 + $0xf0] sm:$0xff]
        %v922 = vld [vmem:[%s248 + $0xf8] sm:$0xff]
        %v923 = vadd.f32 %v859, %v891
        %v924 = vadd.f32 %v860, %v892
        %v925 = vadd.f32 %v861, %v893
        %v926 = vadd.f32 %v862, %v894
        %v927 = vadd.f32 %v863, %v895
        %v928 = vadd.f32 %v864, %v896
        %v929 = vadd.f32 %v865, %v897
        %v930 = vadd.f32 %v866, %v898
        %v931 = vadd.f32 %v867, %v899
        %v932 = vadd.f32 %v868, %v900
        %v933 = vadd.f32 %v869, %v901
        %v934 = vadd.f32 %v870, %v902
        %v935 = vadd.f32 %v871, %v903
        %v936 = vadd.f32 %v872, %v904
        %v937 = vadd.f32 %v873, %v905
        %v938 = vadd.f32 %v874, %v906
        %v939 = vadd.f32 %v875, %v907
        %v940 = vadd.f32 %v876, %v908
        %v941 = vadd.f32 %v877, %v909
        %v942 = vadd.f32 %v878, %v910
        %v943 = vadd.f32 %v879, %v911
        %v944 = vadd.f32 %v880, %v912
        %v945 = vadd.f32 %v881, %v913
        %v946 = vadd.f32 %v882, %v914
        %v947 = vadd.f32 %v883, %v915
        %v948 = vadd.f32 %v884, %v916
        %v949 = vadd.f32 %v885, %v917
        %v950 = vadd.f32 %v886, %v918
        %v951 = vadd.f32 %v887, %v919
        %v952 = vadd.f32 %v888, %v920
        %v953 = vadd.f32 %v889, %v921
        %v954 = vadd.f32 %v890, %v922
        %v955 = vmax.f32 %v923, 0.0
        %v956 = vmax.f32 %v924, 0.0
        %v957 = vmax.f32 %v925, 0.0
        %v958 = vmax.f32 %v926, 0.0
        %v959 = vmax.f32 %v927, 0.0
        %v960 = vmax.f32 %v928, 0.0
        %v961 = vmax.f32 %v929, 0.0
        %v962 = vmax.f32 %v930, 0.0
        %v963 = vmax.f32 %v931, 0.0
        %v964 = vmax.f32 %v932, 0.0
        %v965 = vmax.f32 %v933, 0.0
        %v966 = vmax.f32 %v934, 0.0
        %v967 = vmax.f32 %v935, 0.0
        %v968 = vmax.f32 %v936, 0.0
        %v969 = vmax.f32 %v937, 0.0
        %v970 = vmax.f32 %v938, 0.0
        %v971 = vmax.f32 %v939, 0.0
        %v972 = vmax.f32 %v940, 0.0
        %v973 = vmax.f32 %v941, 0.0
        %v974 = vmax.f32 %v942, 0.0
        %v975 = vmax.f32 %v943, 0.0
        %v976 = vmax.f32 %v944, 0.0
        %v977 = vmax.f32 %v945, 0.0
        %v978 = vmax.f32 %v946, 0.0
        %v979 = vmax.f32 %v947, 0.0
        %v980 = vmax.f32 %v948, 0.0
        %v981 = vmax.f32 %v949, 0.0
        %v982 = vmax.f32 %v950, 0.0
        %v983 = vmax.f32 %v951, 0.0
        %v984 = vmax.f32 %v952, 0.0
        %v985 = vmax.f32 %v953, 0.0
        %v986 = vmax.f32 %v954, 0.0
        %987 = vst.msk [vmem:[%s236] sm:$0xff] %vm383, %v955
        %988 = vst.msk [vmem:[%s236 + $0x8] sm:$0xff] %vm383, %v956
        %989 = vst.msk [vmem:[%s236 + $0x10] sm:$0xff] %vm383, %v957
        %990 = vst.msk [vmem:[%s236 + $0x18] sm:$0xff] %vm383, %v958
        %991 = vst.msk [vmem:[%s236 + $0x20] sm:$0xff] %vm383, %v959
        %992 = vst.msk [vmem:[%s236 + $0x28] sm:$0xff] %vm383, %v960
        %993 = vst.msk [vmem:[%s236 + $0x30] sm:$0xff] %vm383, %v961
        %994 = vst.msk [vmem:[%s236 + $0x38] sm:$0xff] %vm383, %v962
        %995 = vst.msk [vmem:[%s236 + $0x40] sm:$0xff] %vm383, %v963
        %996 = vst.msk [vmem:[%s236 + $0x48] sm:$0xff] %vm383, %v964
        %997 = vst.msk [vmem:[%s236 + $0x50] sm:$0xff] %vm383, %v965
        %998 = vst.msk [vmem:[%s236 + $0x58] sm:$0xff] %vm383, %v966
        %999 = vst.msk [vmem:[%s236 + $0x60] sm:$0xff] %vm383, %v967
        %1000 = vst.msk [vmem:[%s236 + $0x68] sm:$0xff] %vm383, %v968
        %1001 = vst.msk [vmem:[%s236 + $0x70] sm:$0xff] %vm383, %v969
        %1002 = vst.msk [vmem:[%s236 + $0x78] sm:$0xff] %vm383, %v970
        %1003 = vst.msk [vmem:[%s236 + $0x80] sm:$0xff] %vm383, %v971
        %1004 = vst.msk [vmem:[%s236 + $0x88] sm:$0xff] %vm383, %v972
        %1005 = vst.msk [vmem:[%s236 + $0x90] sm:$0xff] %vm383, %v973
        %1006 = vst.msk [vmem:[%s236 + $0x98] sm:$0xff] %vm383, %v974
        %1007 = vst.msk [vmem:[%s236 + $0xa0] sm:$0xff] %vm383, %v975
        %1008 = vst.msk [vmem:[%s236 + $0xa8] sm:$0xff] %vm383, %v976
        %1009 = vst.msk [vmem:[%s236 + $0xb0] sm:$0xff] %vm383, %v977
        %1010 = vst.msk [vmem:[%s236 + $0xb8] sm:$0xff] %vm383, %v978
        %1011 = vst.msk [vmem:[%s236 + $0xc0] sm:$0xff] %vm383, %v979
        %1012 = vst.msk [vmem:[%s236 + $0xc8] sm:$0xff] %vm383, %v980
        %1013 = vst.msk [vmem:[%s236 + $0xd0] sm:$0xff] %vm383, %v981
        %1014 = vst.msk [vmem:[%s236 + $0xd8] sm:$0xff] %vm383, %v982
        %1015 = vst.msk [vmem:[%s236 + $0xe0] sm:$0xff] %vm383, %v983
        %1016 = vst.msk [vmem:[%s236 + $0xe8] sm:$0xff] %vm383, %v984
        %1017 = vst.msk [vmem:[%s236 + $0xf0] sm:$0xff] %vm383, %v985
        %1018 = vst.msk [vmem:[%s236 + $0xf8] sm:$0xff] %vm383, %v986
        %s1019 = sand.u32 %s142, 1
        %s1020 = scalar_lea.sflag [#allocation3], %s1019
        %s1021 = sand.u32 %s142, 1
        %s1022 = smul.addr %s1021, 256
        %s1023 = scalar_lea.vmem [#allocation2], %s1022
        // Predicated region
        $region41: #{block_forward.3} parent=39 // pred_check
          %p1024 = pneg %p152
        $region42: #{block_forward.3} parent=39 // pred_check_branch
          %1026 = sbr.rel (%p1024) target = $region44
        $region43: #{block_forward.3} parent=39 // pred_region
          %s1027 = smul.u32 32, %s19
          %1029 = vsyncadd %s1020, 0
          %s1030 = smul.addr %s1027, 8
          %s1031 = scalar_lea.hbm %s5, %s1030
          %s1032 = sshll.u32 %s1023, 4
          %s1033 = int_to_ptr.vmem [resolvable:$true] %s1032
          %s1034 = sshll.u32 %s1031, 4
          %s1035 = int_to_ptr.hbm [resolvable:$true] %s1034
          %1040 = dma.vmem_to_hbm [thread:$0]  %s1033, 4096, %s1035, %s1020, 128, 128, 8
        $region44: #{block_forward.3} parent=39 // pred_fallthru
          _
      $region40: #{block_forward.3} parent=5 // pred_fallthru
        _
      %p1041 = scmp.le.s32.totalorder 2, %s14
      // Predicated region
      $region45: #{block_forward.3} parent=5 // pred_check
        %p1042 = pneg %p1041
      $region46: #{block_forward.3} parent=5 // pred_check_branch
        %1044 = sbr.rel (%p1042) target = $region48
      $region47: #{block_forward.3} parent=5 // pred_region
        %s1045 = ssub.s32 %s14, 2
        // Predicated region
        $region49: #{block_forward.3} parent=47 // pred_check
          %p1046 = pneg %p158
        $region50: #{block_forward.3} parent=47 // pred_check_branch
          %1048 = sbr.rel (%p1046) target = $region52
        $region51: #{block_forward.3} parent=47 // pred_region
          %s1049 = sand.u32 %s143, 1
          %s1050 = scalar_lea.sflag [#allocation3], %s1049
          %s1051 = sand.u32 %s143, 1
          %s1052 = smul.addr %s1051, 256
          %s1053 = scalar_lea.vmem [#allocation2], %s1052
          %1055 = dma.done %s1050, 4096
        $region52: #{block_forward.3} parent=47 // pred_fallthru
          _
      $region48: #{block_forward.3} parent=5 // pred_fallthru
        _
    $region6: #{block_forward.3} parent=1 // loop_footer
      %s18 = sadd.s32 1, %s14
    $region7: #{block_forward.3} parent=1 // loop_footer_branch
      %13 = sbr.rel target = $region3
    $region8: #{block_forward.3} parent=1 // loop_exit
      _
    %1056 = vsyncpa [#allocation3], 1
    %s1057 = scalar_lea.sflag [#allocation3], 1
    %1058 = vsyncpa %s1057, 1

</llo_original>
